<compile_context>
chip_gen: v7x
topology: tpu7x:2x2x1
jax: 0.10.0
libtpu: 0.0.40
codegen_flags: <defaults>
</compile_context>

<pallas_src>
import jax
import jax.numpy as jnp
from jax.experimental import pallas as pl
from jax.experimental.pallas import tpu as pltpu


def _round_up(x, m):
    return (x + m - 1) // m * m


def b3d_forward(x_ncthw, w1, w2, w3, *, slope=0.01):
    """x_ncthw: (N, Cin, T, H, W); w1:(Cout,Cin,3,3,3); w2:(Cout,Cin,1,3,3); w3:(Cout,Cin,3,1,1)."""
    N, Cin, T, H, W = x_ncthw.shape
    Cout = w1.shape[0]
    Tp, Hp, Wp = T + 2, H + 2, W + 2
    HWp = Hp * Wp
    L_out = _round_up(HWp, 128)                   # lane-dense output / accumulator width
    L_in = _round_up(L_out + 2 * Wp + 2, 128)     # room for the largest static tap shift
    Cout_p = _round_up(Cout, 8)                   # sublane-friendly channel rows

    # ---- fold the three conv weights into one 3x3x3 weight (exact: paddings align) ----
    w_comb = w1.astype(jnp.float32)
    w_comb = w_comb.at[:, :, 1, :, :].add(w2[:, :, 0, :, :])   # 1x3x3 -> kt == 1 plane
    w_comb = w_comb.at[:, :, :, 1, 1].add(w3[:, :, :, 0, 0])   # 3x1x1 -> (kh, kw) == (1, 1)
    # (Cout,Cin,kt,kh,kw) -> (kt, kh*3+kw, Cout, Cin), bf16 for the MXU.
    w_k = jnp.transpose(w_comb, (2, 3, 4, 0, 1)).reshape(3, 9, Cout, Cin)
    if Cout_p > Cout:
        w_k = jnp.pad(w_k, ((0, 0), (0, 0), (0, Cout_p - Cout), (0, 0)))
    w_k = w_k.astype(jnp.bfloat16)

    # ---- activations: channels-first frames, flattened padded spatial on the lane axis ----
    xt = jnp.transpose(x_ncthw, (0, 2, 1, 3, 4)).astype(jnp.bfloat16)   # (N, T, Cin, H, W)
    xp = jnp.pad(xt, ((0, 0), (1, 1), (0, 0), (1, 1), (1, 1)))          # (N, Tp, Cin, Hp, Wp)
    xl = xp.reshape(N, Tp, Cin, HWp)
    xl = jnp.pad(xl, ((0, 0), (0, 0), (0, 0), (0, L_in - HWp)))         # (N, Tp, Cin, L_in)

    def kernel(x0_ref, x1_ref, x2_ref, w_ref, o_ref):
        # x{0,1,2}_ref: (1,1,Cin,L_in) bf16 = padded frames t, t+1, t+2 (i.e. kt = 0, 1, 2)
        # w_ref:        (3, 9, Cout_p, Cin) bf16, resident (constant index map)
        # o_ref:        (1, 1, Cout_p, L_out) bf16
        frames = (x0_ref[0, 0], x1_ref[0, 0], x2_ref[0, 0])      # each (Cin, L_in)
        acc = jnp.zeros((Cout_p, L_out), jnp.float32)
        for dt in range(3):
            f = frames[dt]
            for i in range(9):
                dh, dw = divmod(i, 3)
                delta = dh * Wp + dw
                fs = f[:, delta:delta + L_out]                   # static lane slice = tap shift
                acc = acc + jnp.dot(w_ref[dt, i], fs,
                                    preferred_element_type=jnp.float32)
        y = jnp.where(acc >= 0, acc, slope * acc)                # leaky_relu (slope 0.01)
        o_ref[0, 0] = y.astype(o_ref.dtype)

    flops = 2 * N * T * 27 * Cin * Cout_p * L_out
    bytes_accessed = 2 * (3 * N * T * Cin * L_in          # 3 frame reads per output frame
                          + 27 * Cout_p * Cin             # folded weight
                          + N * T * Cout_p * L_out)       # bf16 output writeback

    out = pl.pallas_call(
        kernel,
        out_shape=jax.ShapeDtypeStruct((N, T, Cout_p, L_out), jnp.bfloat16),
        grid=(N, T),
        in_specs=[
            pl.BlockSpec((1, 1, Cin, L_in), lambda n, t: (n, t, 0, 0)),       # frame t-1 (pad idx t)
            pl.BlockSpec((1, 1, Cin, L_in), lambda n, t: (n, t + 1, 0, 0)),   # frame t
            pl.BlockSpec((1, 1, Cin, L_in), lambda n, t: (n, t + 2, 0, 0)),   # frame t+1
            pl.BlockSpec((3, 9, Cout_p, Cin), lambda n, t: (0, 0, 0, 0)),     # weight, resident
        ],
        out_specs=pl.BlockSpec((1, 1, Cout_p, L_out), lambda n, t: (n, t, 0, 0)),
        compiler_params=pltpu.CompilerParams(
            dimension_semantics=("parallel", "parallel"),
            vmem_limit_bytes=32 * 1024 * 1024),    # explicit; safe on v5e/v6e (128 MiB) and v7x (64 MiB)
        cost_estimate=pl.CostEstimate(
            flops=flops, transcendentals=0, bytes_accessed=bytes_accessed),
    )(xl, xl, xl, w_k)

    # Lane p = h*Wp + w on the padded spatial grid -> crop, drop channel padding, back to NCDHW f32.
    y = out[..., :HWp].reshape(N, T, Cout_p, Hp, Wp)[:, :, :Cout, :H, :W]
    return jnp.transpose(y, (0, 2, 1, 3, 4)).astype(jnp.float32)


# ---------------------------- references for verification ----------------------------

def _conv(x, w, pad, precision=None):
    return jax.lax.conv_general_dilated(
        x, w, window_strides=(1, 1, 1), padding=pad,
        dimension_numbers=("NCDHW", "OIDHW", "NCDHW"), precision=precision)


def _reference_f32(x, w1, w2, w3, slope=0.01):
    """Exact module math in f32 (three separate convs)."""
    hp = jax.lax.Precision.HIGHEST
    y = (_conv(x, w1, ((1, 1), (1, 1), (1, 1)), hp)
         + _conv(x, w2, ((0, 0), (1, 1), (1, 1)), hp)
         + _conv(x, w3, ((1, 1), (0, 0), (0, 0)), hp))
    return jnp.where(y >= 0, y, slope * y)


def _reference_bf16(x, w1, w2, w3, slope=0.01):
    """Same math as the kernel: bf16-rounded x / folded weight, f32 accumulation, f32 output."""
    w_comb = w1
    w_comb = w_comb.at[:, :, 1, :, :].add(w2[:, :, 0, :, :])
    w_comb = w_comb.at[:, :, :, 1, 1].add(w3[:, :, :, 0, 0])
    xq = x.astype(jnp.bfloat16).astype(jnp.float32)
    wq = w_comb.astype(jnp.bfloat16).astype(jnp.float32)
    y = _conv(xq, wq, ((1, 1), (1, 1), (1, 1)))
    return jnp.where(y >= 0, y, slope * y)


if __name__ == "__main__":
    key = jax.random.PRNGKey(0)
    k_x, k1, k2, k3 = jax.random.split(key, 4)

    N, Cin, Cout, T, H, W = 2, 4, 8, 8, 8, 8
    x = jax.random.normal(k_x, (N, Cin, T, H, W), jnp.float32)

    # Deterministic synthetic weights, PyTorch Conv3d layout (out, in, kt, kh, kw).
    w1 = 0.1 * jax.random.normal(k1, (Cout, Cin, 3, 3, 3), jnp.float32)
    w2 = 0.1 * jax.random.normal(k2, (Cout, Cin, 1, 3, 3), jnp.float32)
    w3 = 0.1 * jax.random.normal(k3, (Cout, Cin, 3, 1, 1), jnp.float32)

    y = jax.block_until_ready(b3d_forward(x, w1, w2, w3))
    assert y.shape == (N, Cout, T, H, W)

    # Tight check: same bf16-quantized inputs / folded weight.  Kernel output is bf16, so the
    # tolerance is ~1 bf16 ulp of the output magnitude (plus accumulation-order noise).
    y_bf16_ref = jax.block_until_ready(_reference_bf16(x, w1, w2, w3))
    err_tight = float(jnp.max(jnp.abs(y - y_bf16_ref)))
    assert err_tight < 2.5e-2, f"tight check failed: {err_tight}"

    # Loose check against the exact f32 three-conv module math (bf16 I/O tolerance).
    y_f32_ref = jax.block_until_ready(_reference_f32(x, w1, w2, w3))
    err_loose = float(jnp.max(jnp.abs(y - y_f32_ref)))
    assert err_loose < 8e-2, f"loose check failed: {err_loose}"

    print("KERNEL_OK")
</pallas_src>

<mosaic_0001>
module attributes {stable_mosaic.version = 11 : i64} {
  func.func @kernel(%arg0: i32, %arg1: i32, %arg2: memref<1x1x4x256xbf16, #tpu.memory_space<vmem>>, %arg3: memref<1x1x4x256xbf16, #tpu.memory_space<vmem>>, %arg4: memref<1x1x4x256xbf16, #tpu.memory_space<vmem>>, %arg5: memref<3x9x8x4xbf16, #tpu.memory_space<vmem>>, %arg6: memref<1x1x8x128xbf16, #tpu.memory_space<vmem>>) attributes {dimension_semantics = [#tpu.dimension_semantics<parallel>, #tpu.dimension_semantics<parallel>], iteration_bounds = array<i64: 2, 8>, scalar_prefetch = 0 : i64, scratch_operands = 0 : i64, tpu.core_type = #tpu.core_type<tc>, window_params = [{transform_indices = @transform_0, window_bounds = array<i64: 1, 1, 4, 256>}, {transform_indices = @transform_1, window_bounds = array<i64: 1, 1, 4, 256>}, {transform_indices = @transform_2, window_bounds = array<i64: 1, 1, 4, 256>}, {pipeline_mode = #tpu.pipeline_mode<synchronous>, transform_indices = @transform_3, window_bounds = array<i64: 3, 9, 8, 4>}, {transform_indices = @transform_4, window_bounds = array<i64: 1, 1, 8, 128>}]} {
    %c0 = arith.constant 0 : index
    %c0_0 = arith.constant 0 : index
    %c0_1 = arith.constant 0 : index
    %c0_2 = arith.constant 0 : index
    %0 = vector.load %arg2[%c0, %c0_0, %c0_1, %c0_2] : memref<1x1x4x256xbf16, #tpu.memory_space<vmem>>, vector<1x1x4x256xbf16>
    %1 = vector.shape_cast %0 : vector<1x1x4x256xbf16> to vector<4x256xbf16>
    %c0_3 = arith.constant 0 : index
    %c0_4 = arith.constant 0 : index
    %c0_5 = arith.constant 0 : index
    %c0_6 = arith.constant 0 : index
    %2 = vector.load %arg3[%c0_3, %c0_4, %c0_5, %c0_6] : memref<1x1x4x256xbf16, #tpu.memory_space<vmem>>, vector<1x1x4x256xbf16>
    %3 = vector.shape_cast %2 : vector<1x1x4x256xbf16> to vector<4x256xbf16>
    %c0_7 = arith.constant 0 : index
    %c0_8 = arith.constant 0 : index
    %c0_9 = arith.constant 0 : index
    %c0_10 = arith.constant 0 : index
    %4 = vector.load %arg4[%c0_7, %c0_8, %c0_9, %c0_10] : memref<1x1x4x256xbf16, #tpu.memory_space<vmem>>, vector<1x1x4x256xbf16>
    %5 = vector.shape_cast %4 : vector<1x1x4x256xbf16> to vector<4x256xbf16>
    %cst = arith.constant 0.000000e+00 : f32
    %6 = vector.broadcast %cst : f32 to vector<8x128xf32>
    %7 = vector.extract_strided_slice %1 {offsets = [0, 0], sizes = [4, 128], strides = [1, 1]} : vector<4x256xbf16> to vector<4x128xbf16>
    %c0_11 = arith.constant 0 : index
    %c0_12 = arith.constant 0 : index
    %c0_13 = arith.constant 0 : index
    %c0_14 = arith.constant 0 : index
    %8 = vector.load %arg5[%c0_11, %c0_12, %c0_13, %c0_14] : memref<3x9x8x4xbf16, #tpu.memory_space<vmem>>, vector<1x1x8x4xbf16>
    %9 = vector.shape_cast %8 : vector<1x1x8x4xbf16> to vector<8x4xbf16>
    %cst_15 = arith.constant dense<0.000000e+00> : vector<8x128xf32>
    %10 = tpu.matmul %9, %7, %cst_15 {dimension_numbers = #tpu.dot_dimension_numbers<[1], [0], [0], [1], [0, 0, 1, 1], [], []>} : vector<8x4xbf16>, vector<4x128xbf16>, vector<8x128xf32> -> vector<8x128xf32>
    %11 = arith.addf %6, %10 : vector<8x128xf32>
    %12 = vector.extract_strided_slice %1 {offsets = [0, 1], sizes = [4, 128], strides = [1, 1]} : vector<4x256xbf16> to vector<4x128xbf16>
    %c0_16 = arith.constant 0 : index
    %c1 = arith.constant 1 : index
    %c0_17 = arith.constant 0 : index
    %c0_18 = arith.constant 0 : index
    %13 = vector.load %arg5[%c0_16, %c1, %c0_17, %c0_18] : memref<3x9x8x4xbf16, #tpu.memory_space<vmem>>, vector<1x1x8x4xbf16>
    %14 = vector.shape_cast %13 : vector<1x1x8x4xbf16> to vector<8x4xbf16>
    %cst_19 = arith.constant dense<0.000000e+00> : vector<8x128xf32>
    %15 = tpu.matmul %14, %12, %cst_19 {dimension_numbers = #tpu.dot_dimension_numbers<[1], [0], [0], [1], [0, 0, 1, 1], [], []>} : vector<8x4xbf16>, vector<4x128xbf16>, vector<8x128xf32> -> vector<8x128xf32>
    %16 = arith.addf %11, %15 : vector<8x128xf32>
    %17 = vector.extract_strided_slice %1 {offsets = [0, 2], sizes = [4, 128], strides = [1, 1]} : vector<4x256xbf16> to vector<4x128xbf16>
    %c0_20 = arith.constant 0 : index
    %c2 = arith.constant 2 : index
    %c0_21 = arith.constant 0 : index
    %c0_22 = arith.constant 0 : index
    %18 = vector.load %arg5[%c0_20, %c2, %c0_21, %c0_22] : memref<3x9x8x4xbf16, #tpu.memory_space<vmem>>, vector<1x1x8x4xbf16>
    %19 = vector.shape_cast %18 : vector<1x1x8x4xbf16> to vector<8x4xbf16>
    %cst_23 = arith.constant dense<0.000000e+00> : vector<8x128xf32>
    %20 = tpu.matmul %19, %17, %cst_23 {dimension_numbers = #tpu.dot_dimension_numbers<[1], [0], [0], [1], [0, 0, 1, 1], [], []>} : vector<8x4xbf16>, vector<4x128xbf16>, vector<8x128xf32> -> vector<8x128xf32>
    %21 = arith.addf %16, %20 : vector<8x128xf32>
    %22 = vector.extract_strided_slice %1 {offsets = [0, 10], sizes = [4, 128], strides = [1, 1]} : vector<4x256xbf16> to vector<4x128xbf16>
    %c0_24 = arith.constant 0 : index
    %c3 = arith.constant 3 : index
    %c0_25 = arith.constant 0 : index
    %c0_26 = arith.constant 0 : index
    %23 = vector.load %arg5[%c0_24, %c3, %c0_25, %c0_26] : memref<3x9x8x4xbf16, #tpu.memory_space<vmem>>, vector<1x1x8x4xbf16>
    %24 = vector.shape_cast %23 : vector<1x1x8x4xbf16> to vector<8x4xbf16>
    %cst_27 = arith.constant dense<0.000000e+00> : vector<8x128xf32>
    %25 = tpu.matmul %24, %22, %cst_27 {dimension_numbers = #tpu.dot_dimension_numbers<[1], [0], [0], [1], [0, 0, 1, 1], [], []>} : vector<8x4xbf16>, vector<4x128xbf16>, vector<8x128xf32> -> vector<8x128xf32>
    %26 = arith.addf %21, %25 : vector<8x128xf32>
    %27 = vector.extract_strided_slice %1 {offsets = [0, 11], sizes = [4, 128], strides = [1, 1]} : vector<4x256xbf16> to vector<4x128xbf16>
    %c0_28 = arith.constant 0 : index
    %c4 = arith.constant 4 : index
    %c0_29 = arith.constant 0 : index
    %c0_30 = arith.constant 0 : index
    %28 = vector.load %arg5[%c0_28, %c4, %c0_29, %c0_30] : memref<3x9x8x4xbf16, #tpu.memory_space<vmem>>, vector<1x1x8x4xbf16>
    %29 = vector.shape_cast %28 : vector<1x1x8x4xbf16> to vector<8x4xbf16>
    %cst_31 = arith.constant dense<0.000000e+00> : vector<8x128xf32>
    %30 = tpu.matmul %29, %27, %cst_31 {dimension_numbers = #tpu.dot_dimension_numbers<[1], [0], [0], [1], [0, 0, 1, 1], [], []>} : vector<8x4xbf16>, vector<4x128xbf16>, vector<8x128xf32> -> vector<8x128xf32>
    %31 = arith.addf %26, %30 : vector<8x128xf32>
    %32 = vector.extract_strided_slice %1 {offsets = [0, 12], sizes = [4, 128], strides = [1, 1]} : vector<4x256xbf16> to vector<4x128xbf16>
    %c0_32 = arith.constant 0 : index
    %c5 = arith.constant 5 : index
    %c0_33 = arith.constant 0 : index
    %c0_34 = arith.constant 0 : index
    %33 = vector.load %arg5[%c0_32, %c5, %c0_33, %c0_34] : memref<3x9x8x4xbf16, #tpu.memory_space<vmem>>, vector<1x1x8x4xbf16>
    %34 = vector.shape_cast %33 : vector<1x1x8x4xbf16> to vector<8x4xbf16>
    %cst_35 = arith.constant dense<0.000000e+00> : vector<8x128xf32>
    %35 = tpu.matmul %34, %32, %cst_35 {dimension_numbers = #tpu.dot_dimension_numbers<[1], [0], [0], [1], [0, 0, 1, 1], [], []>} : vector<8x4xbf16>, vector<4x128xbf16>, vector<8x128xf32> -> vector<8x128xf32>
    %36 = arith.addf %31, %35 : vector<8x128xf32>
    %37 = vector.extract_strided_slice %1 {offsets = [0, 20], sizes = [4, 128], strides = [1, 1]} : vector<4x256xbf16> to vector<4x128xbf16>
    %c0_36 = arith.constant 0 : index
    %c6 = arith.constant 6 : index
    %c0_37 = arith.constant 0 : index
    %c0_38 = arith.constant 0 : index
    %38 = vector.load %arg5[%c0_36, %c6, %c0_37, %c0_38] : memref<3x9x8x4xbf16, #tpu.memory_space<vmem>>, vector<1x1x8x4xbf16>
    %39 = vector.shape_cast %38 : vector<1x1x8x4xbf16> to vector<8x4xbf16>
    %cst_39 = arith.constant dense<0.000000e+00> : vector<8x128xf32>
    %40 = tpu.matmul %39, %37, %cst_39 {dimension_numbers = #tpu.dot_dimension_numbers<[1], [0], [0], [1], [0, 0, 1, 1], [], []>} : vector<8x4xbf16>, vector<4x128xbf16>, vector<8x128xf32> -> vector<8x128xf32>
    %41 = arith.addf %36, %40 : vector<8x128xf32>
    %42 = vector.extract_strided_slice %1 {offsets = [0, 21], sizes = [4, 128], strides = [1, 1]} : vector<4x256xbf16> to vector<4x128xbf16>
    %c0_40 = arith.constant 0 : index
    %c7 = arith.constant 7 : index
    %c0_41 = arith.constant 0 : index
    %c0_42 = arith.constant 0 : index
    %43 = vector.load %arg5[%c0_40, %c7, %c0_41, %c0_42] : memref<3x9x8x4xbf16, #tpu.memory_space<vmem>>, vector<1x1x8x4xbf16>
    %44 = vector.shape_cast %43 : vector<1x1x8x4xbf16> to vector<8x4xbf16>
    %cst_43 = arith.constant dense<0.000000e+00> : vector<8x128xf32>
    %45 = tpu.matmul %44, %42, %cst_43 {dimension_numbers = #tpu.dot_dimension_numbers<[1], [0], [0], [1], [0, 0, 1, 1], [], []>} : vector<8x4xbf16>, vector<4x128xbf16>, vector<8x128xf32> -> vector<8x128xf32>
    %46 = arith.addf %41, %45 : vector<8x128xf32>
    %47 = vector.extract_strided_slice %1 {offsets = [0, 22], sizes = [4, 128], strides = [1, 1]} : vector<4x256xbf16> to vector<4x128xbf16>
    %c0_44 = arith.constant 0 : index
    %c8 = arith.constant 8 : index
    %c0_45 = arith.constant 0 : index
    %c0_46 = arith.constant 0 : index
    %48 = vector.load %arg5[%c0_44, %c8, %c0_45, %c0_46] : memref<3x9x8x4xbf16, #tpu.memory_space<vmem>>, vector<1x1x8x4xbf16>
    %49 = vector.shape_cast %48 : vector<1x1x8x4xbf16> to vector<8x4xbf16>
    %cst_47 = arith.constant dense<0.000000e+00> : vector<8x128xf32>
    %50 = tpu.matmul %49, %47, %cst_47 {dimension_numbers = #tpu.dot_dimension_numbers<[1], [0], [0], [1], [0, 0, 1, 1], [], []>} : vector<8x4xbf16>, vector<4x128xbf16>, vector<8x128xf32> -> vector<8x128xf32>
    %51 = arith.addf %46, %50 : vector<8x128xf32>
    %52 = vector.extract_strided_slice %3 {offsets = [0, 0], sizes = [4, 128], strides = [1, 1]} : vector<4x256xbf16> to vector<4x128xbf16>
    %c1_48 = arith.constant 1 : index
    %c0_49 = arith.constant 0 : index
    %c0_50 = arith.constant 0 : index
    %c0_51 = arith.constant 0 : index
    %53 = vector.load %arg5[%c1_48, %c0_49, %c0_50, %c0_51] : memref<3x9x8x4xbf16, #tpu.memory_space<vmem>>, vector<1x1x8x4xbf16>
    %54 = vector.shape_cast %53 : vector<1x1x8x4xbf16> to vector<8x4xbf16>
    %cst_52 = arith.constant dense<0.000000e+00> : vector<8x128xf32>
    %55 = tpu.matmul %54, %52, %cst_52 {dimension_numbers = #tpu.dot_dimension_numbers<[1], [0], [0], [1], [0, 0, 1, 1], [], []>} : vector<8x4xbf16>, vector<4x128xbf16>, vector<8x128xf32> -> vector<8x128xf32>
    %56 = arith.addf %51, %55 : vector<8x128xf32>
    %57 = vector.extract_strided_slice %3 {offsets = [0, 1], sizes = [4, 128], strides = [1, 1]} : vector<4x256xbf16> to vector<4x128xbf16>
    %c1_53 = arith.constant 1 : index
    %c1_54 = arith.constant 1 : index
    %c0_55 = arith.constant 0 : index
    %c0_56 = arith.constant 0 : index
    %58 = vector.load %arg5[%c1_53, %c1_54, %c0_55, %c0_56] : memref<3x9x8x4xbf16, #tpu.memory_space<vmem>>, vector<1x1x8x4xbf16>
    %59 = vector.shape_cast %58 : vector<1x1x8x4xbf16> to vector<8x4xbf16>
    %cst_57 = arith.constant dense<0.000000e+00> : vector<8x128xf32>
    %60 = tpu.matmul %59, %57, %cst_57 {dimension_numbers = #tpu.dot_dimension_numbers<[1], [0], [0], [1], [0, 0, 1, 1], [], []>} : vector<8x4xbf16>, vector<4x128xbf16>, vector<8x128xf32> -> vector<8x128xf32>
    %61 = arith.addf %56, %60 : vector<8x128xf32>
    %62 = vector.extract_strided_slice %3 {offsets = [0, 2], sizes = [4, 128], strides = [1, 1]} : vector<4x256xbf16> to vector<4x128xbf16>
    %c1_58 = arith.constant 1 : index
    %c2_59 = arith.constant 2 : index
    %c0_60 = arith.constant 0 : index
    %c0_61 = arith.constant 0 : index
    %63 = vector.load %arg5[%c1_58, %c2_59, %c0_60, %c0_61] : memref<3x9x8x4xbf16, #tpu.memory_space<vmem>>, vector<1x1x8x4xbf16>
    %64 = vector.shape_cast %63 : vector<1x1x8x4xbf16> to vector<8x4xbf16>
    %cst_62 = arith.constant dense<0.000000e+00> : vector<8x128xf32>
    %65 = tpu.matmul %64, %62, %cst_62 {dimension_numbers = #tpu.dot_dimension_numbers<[1], [0], [0], [1], [0, 0, 1, 1], [], []>} : vector<8x4xbf16>, vector<4x128xbf16>, vector<8x128xf32> -> vector<8x128xf32>
    %66 = arith.addf %61, %65 : vector<8x128xf32>
    %67 = vector.extract_strided_slice %3 {offsets = [0, 10], sizes = [4, 128], strides = [1, 1]} : vector<4x256xbf16> to vector<4x128xbf16>
    %c1_63 = arith.constant 1 : index
    %c3_64 = arith.constant 3 : index
    %c0_65 = arith.constant 0 : index
    %c0_66 = arith.constant 0 : index
    %68 = vector.load %arg5[%c1_63, %c3_64, %c0_65, %c0_66] : memref<3x9x8x4xbf16, #tpu.memory_space<vmem>>, vector<1x1x8x4xbf16>
    %69 = vector.shape_cast %68 : vector<1x1x8x4xbf16> to vector<8x4xbf16>
    %cst_67 = arith.constant dense<0.000000e+00> : vector<8x128xf32>
    %70 = tpu.matmul %69, %67, %cst_67 {dimension_numbers = #tpu.dot_dimension_numbers<[1], [0], [0], [1], [0, 0, 1, 1], [], []>} : vector<8x4xbf16>, vector<4x128xbf16>, vector<8x128xf32> -> vector<8x128xf32>
    %71 = arith.addf %66, %70 : vector<8x128xf32>
    %72 = vector.extract_strided_slice %3 {offsets = [0, 11], sizes = [4, 128], strides = [1, 1]} : vector<4x256xbf16> to vector<4x128xbf16>
    %c1_68 = arith.constant 1 : index
    %c4_69 = arith.constant 4 : index
    %c0_70 = arith.constant 0 : index
    %c0_71 = arith.constant 0 : index
    %73 = vector.load %arg5[%c1_68, %c4_69, %c0_70, %c0_71] : memref<3x9x8x4xbf16, #tpu.memory_space<vmem>>, vector<1x1x8x4xbf16>
    %74 = vector.shape_cast %73 : vector<1x1x8x4xbf16> to vector<8x4xbf16>
    %cst_72 = arith.constant dense<0.000000e+00> : vector<8x128xf32>
    %75 = tpu.matmul %74, %72, %cst_72 {dimension_numbers = #tpu.dot_dimension_numbers<[1], [0], [0], [1], [0, 0, 1, 1], [], []>} : vector<8x4xbf16>, vector<4x128xbf16>, vector<8x128xf32> -> vector<8x128xf32>
    %76 = arith.addf %71, %75 : vector<8x128xf32>
    %77 = vector.extract_strided_slice %3 {offsets = [0, 12], sizes = [4, 128], strides = [1, 1]} : vector<4x256xbf16> to vector<4x128xbf16>
    %c1_73 = arith.constant 1 : index
    %c5_74 = arith.constant 5 : index
    %c0_75 = arith.constant 0 : index
    %c0_76 = arith.constant 0 : index
    %78 = vector.load %arg5[%c1_73, %c5_74, %c0_75, %c0_76] : memref<3x9x8x4xbf16, #tpu.memory_space<vmem>>, vector<1x1x8x4xbf16>
    %79 = vector.shape_cast %78 : vector<1x1x8x4xbf16> to vector<8x4xbf16>
    %cst_77 = arith.constant dense<0.000000e+00> : vector<8x128xf32>
    %80 = tpu.matmul %79, %77, %cst_77 {dimension_numbers = #tpu.dot_dimension_numbers<[1], [0], [0], [1], [0, 0, 1, 1], [], []>} : vector<8x4xbf16>, vector<4x128xbf16>, vector<8x128xf32> -> vector<8x128xf32>
    %81 = arith.addf %76, %80 : vector<8x128xf32>
    %82 = vector.extract_strided_slice %3 {offsets = [0, 20], sizes = [4, 128], strides = [1, 1]} : vector<4x256xbf16> to vector<4x128xbf16>
    %c1_78 = arith.constant 1 : index
    %c6_79 = arith.constant 6 : index
    %c0_80 = arith.constant 0 : index
    %c0_81 = arith.constant 0 : index
    %83 = vector.load %arg5[%c1_78, %c6_79, %c0_80, %c0_81] : memref<3x9x8x4xbf16, #tpu.memory_space<vmem>>, vector<1x1x8x4xbf16>
    %84 = vector.shape_cast %83 : vector<1x1x8x4xbf16> to vector<8x4xbf16>
    %cst_82 = arith.constant dense<0.000000e+00> : vector<8x128xf32>
    %85 = tpu.matmul %84, %82, %cst_82 {dimension_numbers = #tpu.dot_dimension_numbers<[1], [0], [0], [1], [0, 0, 1, 1], [], []>} : vector<8x4xbf16>, vector<4x128xbf16>, vector<8x128xf32> -> vector<8x128xf32>
    %86 = arith.addf %81, %85 : vector<8x128xf32>
    %87 = vector.extract_strided_slice %3 {offsets = [0, 21], sizes = [4, 128], strides = [1, 1]} : vector<4x256xbf16> to vector<4x128xbf16>
    %c1_83 = arith.constant 1 : index
    %c7_84 = arith.constant 7 : index
    %c0_85 = arith.constant 0 : index
    %c0_86 = arith.constant 0 : index
    %88 = vector.load %arg5[%c1_83, %c7_84, %c0_85, %c0_86] : memref<3x9x8x4xbf16, #tpu.memory_space<vmem>>, vector<1x1x8x4xbf16>
    %89 = vector.shape_cast %88 : vector<1x1x8x4xbf16> to vector<8x4xbf16>
    %cst_87 = arith.constant dense<0.000000e+00> : vector<8x128xf32>
    %90 = tpu.matmul %89, %87, %cst_87 {dimension_numbers = #tpu.dot_dimension_numbers<[1], [0], [0], [1], [0, 0, 1, 1], [], []>} : vector<8x4xbf16>, vector<4x128xbf16>, vector<8x128xf32> -> vector<8x128xf32>
    %91 = arith.addf %86, %90 : vector<8x128xf32>
    %92 = vector.extract_strided_slice %3 {offsets = [0, 22], sizes = [4, 128], strides = [1, 1]} : vector<4x256xbf16> to vector<4x128xbf16>
    %c1_88 = arith.constant 1 : index
    %c8_89 = arith.constant 8 : index
    %c0_90 = arith.constant 0 : index
    %c0_91 = arith.constant 0 : index
    %93 = vector.load %arg5[%c1_88, %c8_89, %c0_90, %c0_91] : memref<3x9x8x4xbf16, #tpu.memory_space<vmem>>, vector<1x1x8x4xbf16>
    %94 = vector.shape_cast %93 : vector<1x1x8x4xbf16> to vector<8x4xbf16>
    %cst_92 = arith.constant dense<0.000000e+00> : vector<8x128xf32>
    %95 = tpu.matmul %94, %92, %cst_92 {dimension_numbers = #tpu.dot_dimension_numbers<[1], [0], [0], [1], [0, 0, 1, 1], [], []>} : vector<8x4xbf16>, vector<4x128xbf16>, vector<8x128xf32> -> vector<8x128xf32>
    %96 = arith.addf %91, %95 : vector<8x128xf32>
    %97 = vector.extract_strided_slice %5 {offsets = [0, 0], sizes = [4, 128], strides = [1, 1]} : vector<4x256xbf16> to vector<4x128xbf16>
    %c2_93 = arith.constant 2 : index
    %c0_94 = arith.constant 0 : index
    %c0_95 = arith.constant 0 : index
    %c0_96 = arith.constant 0 : index
    %98 = vector.load %arg5[%c2_93, %c0_94, %c0_95, %c0_96] : memref<3x9x8x4xbf16, #tpu.memory_space<vmem>>, vector<1x1x8x4xbf16>
    %99 = vector.shape_cast %98 : vector<1x1x8x4xbf16> to vector<8x4xbf16>
    %cst_97 = arith.constant dense<0.000000e+00> : vector<8x128xf32>
    %100 = tpu.matmul %99, %97, %cst_97 {dimension_numbers = #tpu.dot_dimension_numbers<[1], [0], [0], [1], [0, 0, 1, 1], [], []>} : vector<8x4xbf16>, vector<4x128xbf16>, vector<8x128xf32> -> vector<8x128xf32>
    %101 = arith.addf %96, %100 : vector<8x128xf32>
    %102 = vector.extract_strided_slice %5 {offsets = [0, 1], sizes = [4, 128], strides = [1, 1]} : vector<4x256xbf16> to vector<4x128xbf16>
    %c2_98 = arith.constant 2 : index
    %c1_99 = arith.constant 1 : index
    %c0_100 = arith.constant 0 : index
    %c0_101 = arith.constant 0 : index
    %103 = vector.load %arg5[%c2_98, %c1_99, %c0_100, %c0_101] : memref<3x9x8x4xbf16, #tpu.memory_space<vmem>>, vector<1x1x8x4xbf16>
    %104 = vector.shape_cast %103 : vector<1x1x8x4xbf16> to vector<8x4xbf16>
    %cst_102 = arith.constant dense<0.000000e+00> : vector<8x128xf32>
    %105 = tpu.matmul %104, %102, %cst_102 {dimension_numbers = #tpu.dot_dimension_numbers<[1], [0], [0], [1], [0, 0, 1, 1], [], []>} : vector<8x4xbf16>, vector<4x128xbf16>, vector<8x128xf32> -> vector<8x128xf32>
    %106 = arith.addf %101, %105 : vector<8x128xf32>
    %107 = vector.extract_strided_slice %5 {offsets = [0, 2], sizes = [4, 128], strides = [1, 1]} : vector<4x256xbf16> to vector<4x128xbf16>
    %c2_103 = arith.constant 2 : index
    %c2_104 = arith.constant 2 : index
    %c0_105 = arith.constant 0 : index
    %c0_106 = arith.constant 0 : index
    %108 = vector.load %arg5[%c2_103, %c2_104, %c0_105, %c0_106] : memref<3x9x8x4xbf16, #tpu.memory_space<vmem>>, vector<1x1x8x4xbf16>
    %109 = vector.shape_cast %108 : vector<1x1x8x4xbf16> to vector<8x4xbf16>
    %cst_107 = arith.constant dense<0.000000e+00> : vector<8x128xf32>
    %110 = tpu.matmul %109, %107, %cst_107 {dimension_numbers = #tpu.dot_dimension_numbers<[1], [0], [0], [1], [0, 0, 1, 1], [], []>} : vector<8x4xbf16>, vector<4x128xbf16>, vector<8x128xf32> -> vector<8x128xf32>
    %111 = arith.addf %106, %110 : vector<8x128xf32>
    %112 = vector.extract_strided_slice %5 {offsets = [0, 10], sizes = [4, 128], strides = [1, 1]} : vector<4x256xbf16> to vector<4x128xbf16>
    %c2_108 = arith.constant 2 : index
    %c3_109 = arith.constant 3 : index
    %c0_110 = arith.constant 0 : index
    %c0_111 = arith.constant 0 : index
    %113 = vector.load %arg5[%c2_108, %c3_109, %c0_110, %c0_111] : memref<3x9x8x4xbf16, #tpu.memory_space<vmem>>, vector<1x1x8x4xbf16>
    %114 = vector.shape_cast %113 : vector<1x1x8x4xbf16> to vector<8x4xbf16>
    %cst_112 = arith.constant dense<0.000000e+00> : vector<8x128xf32>
    %115 = tpu.matmul %114, %112, %cst_112 {dimension_numbers = #tpu.dot_dimension_numbers<[1], [0], [0], [1], [0, 0, 1, 1], [], []>} : vector<8x4xbf16>, vector<4x128xbf16>, vector<8x128xf32> -> vector<8x128xf32>
    %116 = arith.addf %111, %115 : vector<8x128xf32>
    %117 = vector.extract_strided_slice %5 {offsets = [0, 11], sizes = [4, 128], strides = [1, 1]} : vector<4x256xbf16> to vector<4x128xbf16>
    %c2_113 = arith.constant 2 : index
    %c4_114 = arith.constant 4 : index
    %c0_115 = arith.constant 0 : index
    %c0_116 = arith.constant 0 : index
    %118 = vector.load %arg5[%c2_113, %c4_114, %c0_115, %c0_116] : memref<3x9x8x4xbf16, #tpu.memory_space<vmem>>, vector<1x1x8x4xbf16>
    %119 = vector.shape_cast %118 : vector<1x1x8x4xbf16> to vector<8x4xbf16>
    %cst_117 = arith.constant dense<0.000000e+00> : vector<8x128xf32>
    %120 = tpu.matmul %119, %117, %cst_117 {dimension_numbers = #tpu.dot_dimension_numbers<[1], [0], [0], [1], [0, 0, 1, 1], [], []>} : vector<8x4xbf16>, vector<4x128xbf16>, vector<8x128xf32> -> vector<8x128xf32>
    %121 = arith.addf %116, %120 : vector<8x128xf32>
    %122 = vector.extract_strided_slice %5 {offsets = [0, 12], sizes = [4, 128], strides = [1, 1]} : vector<4x256xbf16> to vector<4x128xbf16>
    %c2_118 = arith.constant 2 : index
    %c5_119 = arith.constant 5 : index
    %c0_120 = arith.constant 0 : index
    %c0_121 = arith.constant 0 : index
    %123 = vector.load %arg5[%c2_118, %c5_119, %c0_120, %c0_121] : memref<3x9x8x4xbf16, #tpu.memory_space<vmem>>, vector<1x1x8x4xbf16>
    %124 = vector.shape_cast %123 : vector<1x1x8x4xbf16> to vector<8x4xbf16>
    %cst_122 = arith.constant dense<0.000000e+00> : vector<8x128xf32>
    %125 = tpu.matmul %124, %122, %cst_122 {dimension_numbers = #tpu.dot_dimension_numbers<[1], [0], [0], [1], [0, 0, 1, 1], [], []>} : vector<8x4xbf16>, vector<4x128xbf16>, vector<8x128xf32> -> vector<8x128xf32>
    %126 = arith.addf %121, %125 : vector<8x128xf32>
    %127 = vector.extract_strided_slice %5 {offsets = [0, 20], sizes = [4, 128], strides = [1, 1]} : vector<4x256xbf16> to vector<4x128xbf16>
    %c2_123 = arith.constant 2 : index
    %c6_124 = arith.constant 6 : index
    %c0_125 = arith.constant 0 : index
    %c0_126 = arith.constant 0 : index
    %128 = vector.load %arg5[%c2_123, %c6_124, %c0_125, %c0_126] : memref<3x9x8x4xbf16, #tpu.memory_space<vmem>>, vector<1x1x8x4xbf16>
    %129 = vector.shape_cast %128 : vector<1x1x8x4xbf16> to vector<8x4xbf16>
    %cst_127 = arith.constant dense<0.000000e+00> : vector<8x128xf32>
    %130 = tpu.matmul %129, %127, %cst_127 {dimension_numbers = #tpu.dot_dimension_numbers<[1], [0], [0], [1], [0, 0, 1, 1], [], []>} : vector<8x4xbf16>, vector<4x128xbf16>, vector<8x128xf32> -> vector<8x128xf32>
    %131 = arith.addf %126, %130 : vector<8x128xf32>
    %132 = vector.extract_strided_slice %5 {offsets = [0, 21], sizes = [4, 128], strides = [1, 1]} : vector<4x256xbf16> to vector<4x128xbf16>
    %c2_128 = arith.constant 2 : index
    %c7_129 = arith.constant 7 : index
    %c0_130 = arith.constant 0 : index
    %c0_131 = arith.constant 0 : index
    %133 = vector.load %arg5[%c2_128, %c7_129, %c0_130, %c0_131] : memref<3x9x8x4xbf16, #tpu.memory_space<vmem>>, vector<1x1x8x4xbf16>
    %134 = vector.shape_cast %133 : vector<1x1x8x4xbf16> to vector<8x4xbf16>
    %cst_132 = arith.constant dense<0.000000e+00> : vector<8x128xf32>
    %135 = tpu.matmul %134, %132, %cst_132 {dimension_numbers = #tpu.dot_dimension_numbers<[1], [0], [0], [1], [0, 0, 1, 1], [], []>} : vector<8x4xbf16>, vector<4x128xbf16>, vector<8x128xf32> -> vector<8x128xf32>
    %136 = arith.addf %131, %135 : vector<8x128xf32>
    %137 = vector.extract_strided_slice %5 {offsets = [0, 22], sizes = [4, 128], strides = [1, 1]} : vector<4x256xbf16> to vector<4x128xbf16>
    %c2_133 = arith.constant 2 : index
    %c8_134 = arith.constant 8 : index
    %c0_135 = arith.constant 0 : index
    %c0_136 = arith.constant 0 : index
    %138 = vector.load %arg5[%c2_133, %c8_134, %c0_135, %c0_136] : memref<3x9x8x4xbf16, #tpu.memory_space<vmem>>, vector<1x1x8x4xbf16>
    %139 = vector.shape_cast %138 : vector<1x1x8x4xbf16> to vector<8x4xbf16>
    %cst_137 = arith.constant dense<0.000000e+00> : vector<8x128xf32>
    %140 = tpu.matmul %139, %137, %cst_137 {dimension_numbers = #tpu.dot_dimension_numbers<[1], [0], [0], [1], [0, 0, 1, 1], [], []>} : vector<8x4xbf16>, vector<4x128xbf16>, vector<8x128xf32> -> vector<8x128xf32>
    %141 = arith.addf %136, %140 : vector<8x128xf32>
    %cst_138 = arith.constant 0.000000e+00 : f32
    %142 = vector.broadcast %cst_138 : f32 to vector<8x128xf32>
    %143 = arith.cmpf oge, %141, %142 : vector<8x128xf32>
    %cst_139 = arith.constant 0.00999999977 : f32
    %144 = vector.broadcast %cst_139 : f32 to vector<8x128xf32>
    %145 = arith.mulf %144, %141 : vector<8x128xf32>
    %146 = arith.select %143, %141, %145 : vector<8x128xi1>, vector<8x128xf32>
    %147 = arith.truncf %146 : vector<8x128xf32> to vector<8x128xbf16>
    %c0_140 = arith.constant 0 : index
    %c0_141 = arith.constant 0 : index
    %c0_142 = arith.constant 0 : index
    %c0_143 = arith.constant 0 : index
    %148 = vector.load %arg6[%c0_140, %c0_141, %c0_142, %c0_143] : memref<1x1x8x128xbf16, #tpu.memory_space<vmem>>, vector<1x1x8x128xbf16>
    %149 = vector.shape_cast %148 : vector<1x1x8x128xbf16> to vector<8x128xbf16>
    %150 = vector.shape_cast %147 : vector<8x128xbf16> to vector<1x1x8x128xbf16>
    tpu.vector_store %arg6[%c0_140, %c0_141, %c0_142, %c0_143], %150 {strides = array<i32>} : memref<1x1x8x128xbf16, #tpu.memory_space<vmem>>, vector<1x1x8x128xbf16>,
    return
  }
  func.func @transform_0(%arg0: i32, %arg1: i32) -> (i32, i32, i32, i32) {
    %c0_i32 = arith.constant 0 : i32
    %c0_i32_0 = arith.constant 0 : i32
    %c0_i32_1 = arith.constant 0 : i32
    return %arg0, %arg1, %c0_i32, %c0_i32_0 : i32, i32, i32, i32
  }
  func.func @transform_1(%arg0: i32, %arg1: i32) -> (i32, i32, i32, i32) {
    %c1_i32 = arith.constant 1 : i32
    %0 = arith.addi %arg1, %c1_i32 : i32
    %c0_i32 = arith.constant 0 : i32
    %c0_i32_0 = arith.constant 0 : i32
    %c0_i32_1 = arith.constant 0 : i32
    return %arg0, %0, %c0_i32, %c0_i32_0 : i32, i32, i32, i32
  }
  func.func @transform_2(%arg0: i32, %arg1: i32) -> (i32, i32, i32, i32) {
    %c2_i32 = arith.constant 2 : i32
    %0 = arith.addi %arg1, %c2_i32 : i32
    %c0_i32 = arith.constant 0 : i32
    %c0_i32_0 = arith.constant 0 : i32
    %c0_i32_1 = arith.constant 0 : i32
    return %arg0, %0, %c0_i32, %c0_i32_0 : i32, i32, i32, i32
  }
  func.func @transform_3(%arg0: i32, %arg1: i32) -> (i32, i32, i32, i32) {
    %c0_i32 = arith.constant 0 : i32
    %c0_i32_0 = arith.constant 0 : i32
    %c0_i32_1 = arith.constant 0 : i32
    %c0_i32_2 = arith.constant 0 : i32
    %c0_i32_3 = arith.constant 0 : i32
    return %c0_i32, %c0_i32_0, %c0_i32_1, %c0_i32_2 : i32, i32, i32, i32
  }
  func.func @transform_4(%arg0: i32, %arg1: i32) -> (i32, i32, i32, i32) {
    %c0_i32 = arith.constant 0 : i32
    %c0_i32_0 = arith.constant 0 : i32
    %c0_i32_1 = arith.constant 0 : i32
    return %arg0, %arg1, %c0_i32, %c0_i32_0 : i32, i32, i32, i32
  }
}

</mosaic_0001>

<llo_original>
// kernel: tpu_custom_call.1
$region0: #{tpu_custom_call.1}
  #allocation0 [shape = 'u32[]', space=smem, size = 0x4, offset = 0x4, fixed_abs, tag = 'smem constant byte address 0x4 - core index']
  #allocation1 [shape = 'u32[144,128]{1,0:T(1,128)}', space=vmem, size = 0x12000, scoped, tag = 'internal scratch']
  %s0 = inlined_call_operand.vmem [shape: bf16[2,10,4,256], index: 0, kind: input, shape index: {}]
  %s1 = inlined_call_operand.hbm [shape: bf16[2,10,4,256], index: 1, kind: input, shape index: {}]
  %s2 = inlined_call_operand.vmem [shape: bf16[2,10,4,256], index: 2, kind: input, shape index: {}]
  %s3 = inlined_call_operand.vmem [shape: bf16[3,9,8,4], index: 3, kind: input, shape index: {}]
  %s4 = inlined_call_operand.hbm [shape: bf16[2,8,8,128], index: 4, kind: output, shape index: {}]
  %s5 = sld [smem:[#allocation0]]
  $region53: #{tpu_custom_call.1} parent=0
    _
  %s7 = ssub.s32 1, %s5
  %s8 = scalar_select 0, %s7, %s5
  $region1: #{tpu_custom_call.1} parent=0
    #allocation2 [shape = 'u8[4096]{0}', space=vmem, size = 0x1000, scoped, tag = 'input window, operand 1']
    #allocation3 [shape = 's32[2]{0}', space=sflag, size = 0x8, scoped, tag = 'scoped memory for tpu_custom_call.1']
    #allocation4 [shape = 's32[2]{0}', space=sflag, size = 0x8, scoped, tag = 'scoped memory for tpu_custom_call.1']
    #allocation5 [shape = 'u8[4096]{0}', space=vmem, size = 0x1000, scoped, tag = 'output window, operand 0']
    %9 = vsyncpa [#allocation3], 0
    %s10 = scalar_lea.sflag [#allocation3], 1
    %11 = vsyncpa %s10, 0
    %12 = vsyncpa [#allocation4], 0
    %s13 = scalar_lea.sflag [#allocation4], 1
    %14 = vsyncpa %s13, 0
    loop: start=0, step=1, limit=18
    $region2: #{tpu_custom_call.1} parent=1 // loop_pre_header
      _
    $region3: #{tpu_custom_call.1} parent=1 // loop_header
      %s16 = sphi 0, %s20
      %p17 = scmp.ge.s32.totalorder %s16, 18
      %s23 = sphi 0, %s35
      %s24 = sphi 0, %s31
      %s25 = sphi 0, %s23
      %s26 = sphi 0, %s24
      %s27 = sphi 0, %s25
      %s28 = sphi 0, %s26
      %s40 = sphi 0, %s42
      %s43 = sphi 0, %s40
      %s44 = sphi 0, %s43
      %s60 = sphi 0, %s44
      %s70 = sphi 0, %s72
      %s73 = sphi 0, %s70
      %s74 = sphi 0, %s73
      %s90 = sphi 0, %s74
      %s100 = sphi 0, %s102
      %s103 = sphi 0, %s100
      %s104 = sphi 0, %s103
      %s120 = sphi 0, %s104
      %s124 = sphi 0, %s124
      %s126 = sphi 0, %s124
      %s127 = sphi 0, %s126
      %s141 = sphi 0, %s127
      %s149 = sphi 0, %s151
      %s152 = sphi 0, %s149
      %s153 = sphi 0, %s152
      %s169 = sphi 0, %s153
    $region4: #{tpu_custom_call.1} parent=1 // loop_header_branch
      %19 = sbr.rel (%p17) target = $region8
    $region5: #{tpu_custom_call.1} parent=1 // loop_body
      %s21 = ssub.s32 %s16, 1
      %s22 = ssub.s32 %s16, 2
      %s29 = sadd.s32 1, %s24
      %p30 = scmp.ge.s32.totalorder %s29, 8
      %s31 = scalar_select %p30, 0, %s29
      %s32 = sadd.s32 1, %s23
      %s33 = scalar_select %p30, %s32, %s23
      %p34 = scmp.ge.s32.totalorder %s33, 2
      %s35 = scalar_select %p34, 0, %s33
      %s36 = ssub.s32 %s23, %s35
      %s37 = ssub.s32 %s24, %s31
      %s38 = sor.u32 %s36, %s37
      %p39 = scmp.eq.s32.totalorder %s38, 0
      %s41 = sadd.s32 %s40, 1
      %s42 = scalar_select %p39, %s40, %s41
      %p45 = pneg %p39
      %p46 = scmp.eq.s32.totalorder %s16, 15
      %p47 = por %p45, %p46
      %p48 = scmp.ne.s32.totalorder %s40, %s43
      %p49 = scmp.eq.s32.totalorder %s16, 0
      %p50 = por %p48, %p49
      %p51 = scmp.ne.s32.totalorder %s40, %s43
      %p52 = scmp.eq.s32.totalorder %s21, 15
      %p53 = por %p51, %p52
      %p54 = scmp.ne.s32.totalorder %s43, %s44
      %p55 = scmp.eq.s32.totalorder %s21, 0
      %p56 = por %p54, %p55
      %p57 = scmp.ne.s32.totalorder %s43, %s44
      %p58 = scmp.eq.s32.totalorder %s22, 15
      %p59 = por %p57, %p58
      %p61 = scmp.ne.s32.totalorder %s44, %s60
      %p62 = scmp.eq.s32.totalorder %s22, 0
      %p63 = por %p61, %p62
      %s64 = sadd.s32 %s24, 1
      %s65 = sadd.s32 %s31, 1
      %s66 = ssub.s32 %s23, %s35
      %s67 = ssub.s32 %s64, %s65
      %s68 = sor.u32 %s66, %s67
      %p69 = scmp.eq.s32.totalorder %s68, 0
      %s71 = sadd.s32 %s70, 1
      %s72 = scalar_select %p69, %s70, %s71
      %p75 = pneg %p69
      %p76 = scmp.eq.s32.totalorder %s16, 15
      %p77 = por %p75, %p76
      %p78 = scmp.ne.s32.totalorder %s70, %s73
      %p79 = scmp.eq.s32.totalorder %s16, 0
      %p80 = por %p78, %p79
      %p81 = scmp.ne.s32.totalorder %s70, %s73
      %p82 = scmp.eq.s32.totalorder %s21, 15
      %p83 = por %p81, %p82
      %p84 = scmp.ne.s32.totalorder %s73, %s74
      %p85 = scmp.eq.s32.totalorder %s21, 0
      %p86 = por %p84, %p85
      %p87 = scmp.ne.s32.totalorder %s73, %s74
      %p88 = scmp.eq.s32.totalorder %s22, 15
      %p89 = por %p87, %p88
      %p91 = scmp.ne.s32.totalorder %s74, %s90
      %p92 = scmp.eq.s32.totalorder %s22, 0
      %p93 = por %p91, %p92
      %s94 = sadd.s32 %s24, 2
      %s95 = sadd.s32 %s31, 2
      %s96 = ssub.s32 %s23, %s35
      %s97 = ssub.s32 %s94, %s95
      %s98 = sor.u32 %s96, %s97
      %p99 = scmp.eq.s32.totalorder %s98, 0
      %s101 = sadd.s32 %s100, 1
      %s102 = scalar_select %p99, %s100, %s101
      %p105 = pneg %p99
      %p106 = scmp.eq.s32.totalorder %s16, 15
      %p107 = por %p105, %p106
      %p108 = scmp.ne.s32.totalorder %s100, %s103
      %p109 = scmp.eq.s32.totalorder %s16, 0
      %p110 = por %p108, %p109
      %p111 = scmp.ne.s32.totalorder %s100, %s103
      %p112 = scmp.eq.s32.totalorder %s21, 15
      %p113 = por %p111, %p112
      %p114 = scmp.ne.s32.totalorder %s103, %s104
      %p115 = scmp.eq.s32.totalorder %s21, 0
      %p116 = por %p114, %p115
      %p117 = scmp.ne.s32.totalorder %s103, %s104
      %p118 = scmp.eq.s32.totalorder %s22, 15
      %p119 = por %p117, %p118
      %p121 = scmp.ne.s32.totalorder %s104, %s120
      %p122 = scmp.eq.s32.totalorder %s22, 0
      %p123 = por %p121, %p122
      %s125 = sadd.s32 %s124, 1
      %p128 = scmp.eq.s32.totalorder %s16, 15
      %p129 = scmp.ne.s32.totalorder %s124, %s126
      %p130 = scmp.eq.s32.totalorder %s16, 0
      %p131 = por %p129, %p130
      %p132 = scmp.ne.s32.totalorder %s124, %s126
      %p133 = scmp.eq.s32.totalorder %s21, 15
      %p134 = por %p132, %p133
      %p135 = scmp.ne.s32.totalorder %s126, %s127
      %p136 = scmp.eq.s32.totalorder %s21, 0
      %p137 = por %p135, %p136
      %p138 = scmp.ne.s32.totalorder %s126, %s127
      %p139 = scmp.eq.s32.totalorder %s22, 15
      %p140 = por %p138, %p139
      %p142 = scmp.ne.s32.totalorder %s127, %s141
      %p143 = scmp.eq.s32.totalorder %s22, 0
      %p144 = por %p142, %p143
      %s145 = ssub.s32 %s23, %s35
      %s146 = ssub.s32 %s24, %s31
      %s147 = sor.u32 %s145, %s146
      %p148 = scmp.eq.s32.totalorder %s147, 0
      %s150 = sadd.s32 %s149, 1
      %s151 = scalar_select %p148, %s149, %s150
      %p154 = pneg %p148
      %p155 = scmp.eq.s32.totalorder %s16, 15
      %p156 = por %p154, %p155
      %p157 = scmp.ne.s32.totalorder %s149, %s152
      %p158 = scmp.eq.s32.totalorder %s16, 0
      %p159 = por %p157, %p158
      %p160 = scmp.ne.s32.totalorder %s149, %s152
      %p161 = scmp.eq.s32.totalorder %s21, 15
      %p162 = por %p160, %p161
      %p163 = scmp.ne.s32.totalorder %s152, %s153
      %p164 = scmp.eq.s32.totalorder %s21, 0
      %p165 = por %p163, %p164
      %p166 = scmp.ne.s32.totalorder %s152, %s153
      %p167 = scmp.eq.s32.totalorder %s22, 15
      %p168 = por %p166, %p167
      %p170 = scmp.ne.s32.totalorder %s153, %s169
      %p171 = scmp.eq.s32.totalorder %s22, 0
      %p172 = por %p170, %p171
      %p173 = scmp.le.s32.totalorder 1, %s16
      %p174 = scmp.lt.s32.totalorder %s16, 17
      %p175 = pnand %p173, %p174
      %p176 = pneg %p175
      // Predicated region
      $region9: #{tpu_custom_call.1} parent=5 // pred_check
        _
      $region10: #{tpu_custom_call.1} parent=5 // pred_check_branch
        %178 = sbr.rel (%p175) target = $region12
      $region11: #{tpu_custom_call.1} parent=5 // pred_region
        %s179 = ssub.s32 %s16, 1
        // Predicated region
        $region13: #{tpu_custom_call.1} parent=11 // pred_check
          %p180 = pneg %p137
        $region14: #{tpu_custom_call.1} parent=11 // pred_check_branch
          %182 = sbr.rel (%p180) target = $region16
        $region15: #{tpu_custom_call.1} parent=11 // pred_region
          _
        $region16: #{tpu_custom_call.1} parent=11 // pred_fallthru
          _
      $region12: #{tpu_custom_call.1} parent=5 // pred_fallthru
        _
      %p183 = scmp.lt.s32.totalorder %s16, 16
      // Predicated region
      $region17: #{tpu_custom_call.1} parent=5 // pred_check
        %p184 = pneg %p183
      $region18: #{tpu_custom_call.1} parent=5 // pred_check_branch
        %186 = sbr.rel (%p184) target = $region20
      $region19: #{tpu_custom_call.1} parent=5 // pred_region
        // Predicated region
        $region21: #{tpu_custom_call.1} parent=19 // pred_check
          %p187 = pneg %p50
        $region22: #{tpu_custom_call.1} parent=19 // pred_check_branch
          %189 = sbr.rel (%p187) target = $region24
        $region23: #{tpu_custom_call.1} parent=19 // pred_region
          %p190 = scmp.lt.s32.totalorder %s23, 1
          %s191 = scalar_select %p190, %s23, 1
          %p192 = scmp.lt.s32.totalorder %s24, 9
          %s193 = scalar_select %p192, %s24, 9
          %s194 = smul.addr %s193, 2
          %s195 = smul.addr %s191, 20
          %s196 = sadd.s32 %s194, %s195
          %s197 = smul.addr %s196, 2
          %s198 = scalar_lea.vmem %s0, %s197
        $region24: #{tpu_custom_call.1} parent=19 // pred_fallthru
          _
        // Predicated region
        $region25: #{tpu_custom_call.1} parent=19 // pred_check
          %p199 = pneg %p80
        $region26: #{tpu_custom_call.1} parent=19 // pred_check_branch
          %201 = sbr.rel (%p199) target = $region28
        $region27: #{tpu_custom_call.1} parent=19 // pred_region
          %s202 = sand.u32 %s70, 1
          %s203 = scalar_lea.sflag [#allocation3], %s202
          %s204 = sand.u32 %s70, 1
          %s205 = smul.addr %s204, 4
          %s206 = scalar_lea.vmem [#allocation2], %s205
          %s207 = sadd.s32 %s24, 1
          %s209 = ssub.s32 64, 64
          %210 = vsyncadd %s203, %s209
          %s211 = smul.addr %s207, 2
          %s212 = smul.addr %s23, 20
          %s213 = sadd.s32 %s211, %s212
          %s214 = smul.addr %s213, 32
          %s215 = scalar_lea.hbm %s1, %s214
          %s217 = sshll.u32 %s206, 4
          %s218 = int_to_ptr.vmem [resolvable:$true] %s217
          %220 = dma.hbm_to_vmem [thread:$0]  %s215, 64, %s218, %s203
        $region28: #{tpu_custom_call.1} parent=19 // pred_fallthru
          _
        // Predicated region
        $region29: #{tpu_custom_call.1} parent=19 // pred_check
          %p221 = pneg %p110
        $region30: #{tpu_custom_call.1} parent=19 // pred_check_branch
          %223 = sbr.rel (%p221) target = $region32
        $region31: #{tpu_custom_call.1} parent=19 // pred_region
          %s224 = sadd.s32 %s24, 2
          %p225 = scmp.lt.s32.totalorder %s23, 1
          %s226 = scalar_select %p225, %s23, 1
          %p227 = scmp.lt.s32.totalorder %s224, 9
          %s228 = scalar_select %p227, %s224, 9
          %s229 = smul.addr %s228, 2
          %s230 = smul.addr %s226, 20
          %s231 = sadd.s32 %s229, %s230
          %s232 = smul.addr %s231, 2
          %s233 = scalar_lea.vmem %s2, %s232
          %s234 = sadd.s32 %s24, 2
        $region32: #{tpu_custom_call.1} parent=19 // pred_fallthru
          _
      $region20: #{tpu_custom_call.1} parent=5 // pred_fallthru
        _
      %p235 = scmp.le.s32.totalorder 1, %s16
      %p236 = scmp.lt.s32.totalorder %s16, 17
      %p237 = pnand %p235, %p236
      %p238 = pneg %p237
      // Predicated region
      $region33: #{tpu_custom_call.1} parent=5 // pred_check
        _
      $region34: #{tpu_custom_call.1} parent=5 // pred_check_branch
        %240 = sbr.rel (%p237) target = $region36
      $region35: #{tpu_custom_call.1} parent=5 // pred_region
        %s241 = ssub.s32 %s16, 1
        %s242 = sand.u32 %s73, 1
        %s243 = scalar_lea.sflag [#allocation3], %s242
        %s244 = sand.u32 %s73, 1
        %s245 = smul.addr %s244, 4
        %s246 = scalar_lea.vmem [#allocation2], %s245
        // Predicated region
        $region37: #{tpu_custom_call.1} parent=35 // pred_check
          %p247 = pneg %p86
        $region38: #{tpu_custom_call.1} parent=35 // pred_check_branch
          %249 = sbr.rel (%p247) target = $region40
        $region39: #{tpu_custom_call.1} parent=35 // pred_region
          %250 = dma.done %s243, 64
        $region40: #{tpu_custom_call.1} parent=35 // pred_fallthru
          _
        %p251 = scmp.lt.s32.totalorder %s25, 1
        %s252 = scalar_select %p251, %s25, 1
        %p253 = scmp.lt.s32.totalorder %s26, 9
        %s254 = scalar_select %p253, %s26, 9
        %s255 = smul.addr %s254, 2
        %s256 = smul.addr %s252, 20
        %s257 = sadd.s32 %s255, %s256
        %s258 = smul.addr %s257, 2
        %s259 = scalar_lea.vmem %s0, %s258
        %p260 = pneg %p56
        %p261 = pneg %p53
        %s262 = sand.u32 %s73, 1
        %s263 = scalar_lea.sflag [#allocation3], %s262
        %s264 = sand.u32 %s73, 1
        %s265 = smul.addr %s264, 4
        %s266 = scalar_lea.vmem [#allocation2], %s265
        %p267 = pneg %p86
        %p268 = pneg %p83
        %s269 = sadd.s32 %s26, 2
        %p270 = scmp.lt.s32.totalorder %s25, 1
        %s271 = scalar_select %p270, %s25, 1
        %p272 = scmp.lt.s32.totalorder %s269, 9
        %s273 = scalar_select %p272, %s269, 9
        %s274 = smul.addr %s273, 2
        %s275 = smul.addr %s271, 20
        %s276 = sadd.s32 %s274, %s275
        %s277 = smul.addr %s276, 2
        %s278 = scalar_lea.vmem %s2, %s277
        %p279 = pneg %p116
        %p280 = pneg %p113
        %p281 = pneg %p137
        %p282 = pneg %p134
        %p283 = pneg %p165
        %p284 = pneg %p162
        %s285 = sand.u32 %s152, 1
        %s286 = scalar_lea.sflag [#allocation4], %s285
        %s287 = sand.u32 %s152, 1
        %s288 = smul.addr %s287, 4
        %s289 = scalar_lea.vmem [#allocation5], %s288
        %p290 = scmp.lt.s32.totalorder %s25, 1
        %s291 = scalar_select %p290, %s25, 1
        %p292 = scmp.lt.s32.totalorder %s26, 9
        %s293 = scalar_select %p292, %s26, 9
        %s294 = smul.addr %s293, 2
        %s295 = smul.addr %s291, 20
        %s296 = sadd.s32 %s294, %s295
        %s297 = smul.addr %s296, 2
        %s298 = scalar_lea.vmem %s0, %s297
        %s299 = sadd.s32 %s26, 1
        %s300 = sadd.s32 %s26, 2
        %p301 = scmp.lt.s32.totalorder %s25, 1
        %s302 = scalar_select %p301, %s25, 1
        %p303 = scmp.lt.s32.totalorder %s300, 9
        %s304 = scalar_select %p303, %s300, 9
        %s305 = smul.addr %s304, 2
        %s306 = smul.addr %s302, 20
        %s307 = sadd.s32 %s305, %s306
        %s308 = smul.addr %s307, 2
        %s309 = scalar_lea.vmem %s2, %s308
        %s310 = sadd.s32 %s26, 2
        %v312 = vld [vmem:[%s298] sm:$0xf]
        %v313 = vld [vmem:[%s246] sm:$0xf]
        %v314 = vld [vmem:[%s309] sm:$0xf]
        %v315 = vld [vmem:[%s3] sm:$0xf]
        %s316 = scalar_lea.vmem %s3, 4
        %v317 = vld [vmem:[%s316] sm:$0xf]
        %v320 = vunpack.c.l.s4 1983009808
        %v321 = vunpack.c.0.s8 %v320
        %v322 = vlaneseq
        %v323 = vshrl.u32 %v322, 7
        %v324 = vsub.s32 %v321, %v323
        %v325 = vrot.slane %v312, %v324
        %v326 = vcombine.high %v325, %v325
        %327 = vrot.lane.b32.xlu0 %v325, 127
        %v328 = vpop.permute.xlu0 %327
        %329 = vrot.lane.b32.xlu0 %v326, 127
        %v330 = vpop.permute.xlu0 %329
        %vm331 = vcmask 1039360
        %v332 = vsel %vm331, %v328, %v330
        %vm333 = vcmask 31744
        %v335 = vsel %vm333, %v317, 0
        %vm337 = vcmask 1041408
        %v339 = vsel %vm337, %v332, 0
        %341 = vmatprep.subr.bf16.mxu0 0
        %342 = vmatpush1.bf16.msra.mxu0 %v339
        %343 = vmatprep.subr.bf16.mxu0 0
        %344 = vmatpush1.bf16.msra.mxu0 0
        %345 = vmatprep.subr.bf16.mxu0 0
        %346 = vmatpush1.bf16.msra.mxu0 0
        %347 = vmatprep.subr.bf16.mxu0 0
        %348 = vmatpush1.bf16.msra.mxu0 0
        %349 = vmatprep.subr.bf16.mxu0 0
        %350 = vmatpush1.bf16.msra.mxu0 0
        %351 = vmatprep.subr.bf16.mxu0 0
        %352 = vmatpush1.bf16.msra.mxu0 0
        %353 = vmatprep.subr.bf16.mxu0 0
        %354 = vmatpush1.bf16.msra.mxu0 0
        %355 = vmatprep.subr.bf16.mxu0 0
        %356 = vmatpush1.bf16.msra.mxu0 0
        %357 = vmatprep.subr.bf16.mxu0 0
        %358 = vmatpush1.bf16.msra.mxu0 0
        %359 = vmatprep.subr.bf16.mxu0 0
        %360 = vmatpush1.bf16.msra.mxu0 0
        %361 = vmatprep.subr.bf16.mxu0 0
        %362 = vmatpush1.bf16.msra.mxu0 0
        %363 = vmatprep.subr.bf16.mxu0 0
        %364 = vmatpush1.bf16.msra.mxu0 0
        %365 = vmatprep.subr.bf16.mxu0 0
        %366 = vmatpush1.bf16.msra.mxu0 0
        %367 = vmatprep.subr.bf16.mxu0 0
        %368 = vmatpush1.bf16.msra.mxu0 0
        %369 = vmatprep.subr.bf16.mxu0 0
        %370 = vmatpush1.bf16.msra.mxu0 0
        %371 = vmatprep.subr.bf16.mxu0 0
        %372 = vmatpush1.bf16.msra.mxu0 0
        %373 = vmatprep.mubr.bf16.mxu0 0
        %374 = vmatmul.mubr.bf16.gmra.mrb[0].mxu0 %v335
        %v375 = vpop.f32.mrb[0].mxu0
        %v376 = vadd.f32 0.0, %v375
        %v377 = vpop.f32.mrb[0].mxu0
        %v378 = vpop.f32.mrb[0].mxu0
        %v379 = vpop.f32.mrb[0].mxu0
        %380 = vdwg.mxu0
        %v382 = vsel %vm333, %v315, 0
        %v385 = vsel %vm337, %v312, 0
        %387 = vmatprep.subr.bf16.mxu0 0
        %388 = vmatpush1.bf16.msra.mxu0 %v385
        %389 = vmatprep.subr.bf16.mxu0 0
        %390 = vmatpush1.bf16.msra.mxu0 0
        %391 = vmatprep.subr.bf16.mxu0 0
        %392 = vmatpush1.bf16.msra.mxu0 0
        %393 = vmatprep.subr.bf16.mxu0 0
        %394 = vmatpush1.bf16.msra.mxu0 0
        %395 = vmatprep.subr.bf16.mxu0 0
        %396 = vmatpush1.bf16.msra.mxu0 0
        %397 = vmatprep.subr.bf16.mxu0 0
        %398 = vmatpush1.bf16.msra.mxu0 0
        %399 = vmatprep.subr.bf16.mxu0 0
        %400 = vmatpush1.bf16.msra.mxu0 0
        %401 = vmatprep.subr.bf16.mxu0 0
        %402 = vmatpush1.bf16.msra.mxu0 0
        %403 = vmatprep.subr.bf16.mxu0 0
        %404 = vmatpush1.bf16.msra.mxu0 0
        %405 = vmatprep.subr.bf16.mxu0 0
        %406 = vmatpush1.bf16.msra.mxu0 0
        %407 = vmatprep.subr.bf16.mxu0 0
        %408 = vmatpush1.bf16.msra.mxu0 0
        %409 = vmatprep.subr.bf16.mxu0 0
        %410 = vmatpush1.bf16.msra.mxu0 0
        %411 = vmatprep.subr.bf16.mxu0 0
        %412 = vmatpush1.bf16.msra.mxu0 0
        %413 = vmatprep.subr.bf16.mxu0 0
        %414 = vmatpush1.bf16.msra.mxu0 0
        %415 = vmatprep.subr.bf16.mxu0 0
        %416 = vmatpush1.bf16.msra.mxu0 0
        %417 = vmatprep.subr.bf16.mxu0 0
        %418 = vmatpush1.bf16.msra.mxu0 0
        %419 = vmatprep.mubr.bf16.mxu0 0
        %420 = vmatmul.mubr.bf16.gmra.mrb[0].mxu0 %v382
        %v421 = vpop.f32.mrb[0].mxu0
        %v422 = vadd.f32 %v376, %v421
        %v423 = vpop.f32.mrb[0].mxu0
        %v424 = vpop.f32.mrb[0].mxu0
        %v425 = vpop.f32.mrb[0].mxu0
        %426 = vdwg.mxu0
        %s427 = scalar_lea.vmem %s3, 8
        %v428 = vld [vmem:[%s427] sm:$0xf]
        %429 = vrot.lane.b32.xlu0 %v325, 126
        %v430 = vpop.permute.xlu0 %429
        %431 = vrot.lane.b32.xlu0 %v326, 126
        %v432 = vpop.permute.xlu0 %431
        %vm433 = vcmask 1031168
        %v434 = vsel %vm433, %v430, %v432
        %v436 = vsel %vm333, %v428, 0
        %v439 = vsel %vm337, %v434, 0
        %441 = vmatprep.subr.bf16.mxu0 0
        %442 = vmatpush1.bf16.msra.mxu0 %v439
        %443 = vmatprep.subr.bf16.mxu0 0
        %444 = vmatpush1.bf16.msra.mxu0 0
        %445 = vmatprep.subr.bf16.mxu0 0
        %446 = vmatpush1.bf16.msra.mxu0 0
        %447 = vmatprep.subr.bf16.mxu0 0
        %448 = vmatpush1.bf16.msra.mxu0 0
        %449 = vmatprep.subr.bf16.mxu0 0
        %450 = vmatpush1.bf16.msra.mxu0 0
        %451 = vmatprep.subr.bf16.mxu0 0
        %452 = vmatpush1.bf16.msra.mxu0 0
        %453 = vmatprep.subr.bf16.mxu0 0
        %454 = vmatpush1.bf16.msra.mxu0 0
        %455 = vmatprep.subr.bf16.mxu0 0
        %456 = vmatpush1.bf16.msra.mxu0 0
        %457 = vmatprep.subr.bf16.mxu0 0
        %458 = vmatpush1.bf16.msra.mxu0 0
        %459 = vmatprep.subr.bf16.mxu0 0
        %460 = vmatpush1.bf16.msra.mxu0 0
        %461 = vmatprep.subr.bf16.mxu0 0
        %462 = vmatpush1.bf16.msra.mxu0 0
        %463 = vmatprep.subr.bf16.mxu0 0
        %464 = vmatpush1.bf16.msra.mxu0 0
        %465 = vmatprep.subr.bf16.mxu0 0
        %466 = vmatpush1.bf16.msra.mxu0 0
        %467 = vmatprep.subr.bf16.mxu0 0
        %468 = vmatpush1.bf16.msra.mxu0 0
        %469 = vmatprep.subr.bf16.mxu0 0
        %470 = vmatpush1.bf16.msra.mxu0 0
        %471 = vmatprep.subr.bf16.mxu0 0
        %472 = vmatpush1.bf16.msra.mxu0 0
        %473 = vmatprep.mubr.bf16.mxu0 0
        %474 = vmatmul.mubr.bf16.gmra.mrb[0].mxu0 %v436
        %v475 = vpop.f32.mrb[0].mxu0
        %v476 = vadd.f32 0.0, %v475
        %v477 = vpop.f32.mrb[0].mxu0
        %v478 = vpop.f32.mrb[0].mxu0
        %v479 = vpop.f32.mrb[0].mxu0
        %480 = vdwg.mxu0
        %v481 = vadd.f32 %v422, %v476
        %s482 = scalar_lea.vmem %s3, 12
        %v483 = vld [vmem:[%s482] sm:$0xf]
        %484 = vrot.lane.b32.xlu0 %v325, 118
        %v485 = vpop.permute.xlu0 %484
        %486 = vrot.lane.b32.xlu0 %v326, 118
        %v487 = vpop.permute.xlu0 %486
        %vm488 = vcmask 965632
        %v489 = vsel %vm488, %v485, %v487
        %v491 = vsel %vm333, %v483, 0
        %v494 = vsel %vm337, %v489, 0
        %496 = vmatprep.subr.bf16.mxu0 0
        %497 = vmatpush1.bf16.msra.mxu0 %v494
        %498 = vmatprep.subr.bf16.mxu0 0
        %499 = vmatpush1.bf16.msra.mxu0 0
        %500 = vmatprep.subr.bf16.mxu0 0
        %501 = vmatpush1.bf16.msra.mxu0 0
        %502 = vmatprep.subr.bf16.mxu0 0
        %503 = vmatpush1.bf16.msra.mxu0 0
        %504 = vmatprep.subr.bf16.mxu0 0
        %505 = vmatpush1.bf16.msra.mxu0 0
        %506 = vmatprep.subr.bf16.mxu0 0
        %507 = vmatpush1.bf16.msra.mxu0 0
        %508 = vmatprep.subr.bf16.mxu0 0
        %509 = vmatpush1.bf16.msra.mxu0 0
        %510 = vmatprep.subr.bf16.mxu0 0
        %511 = vmatpush1.bf16.msra.mxu0 0
        %512 = vmatprep.subr.bf16.mxu0 0
        %513 = vmatpush1.bf16.msra.mxu0 0
        %514 = vmatprep.subr.bf16.mxu0 0
        %515 = vmatpush1.bf16.msra.mxu0 0
        %516 = vmatprep.subr.bf16.mxu0 0
        %517 = vmatpush1.bf16.msra.mxu0 0
        %518 = vmatprep.subr.bf16.mxu0 0
        %519 = vmatpush1.bf16.msra.mxu0 0
        %520 = vmatprep.subr.bf16.mxu0 0
        %521 = vmatpush1.bf16.msra.mxu0 0
        %522 = vmatprep.subr.bf16.mxu0 0
        %523 = vmatpush1.bf16.msra.mxu0 0
        %524 = vmatprep.subr.bf16.mxu0 0
        %525 = vmatpush1.bf16.msra.mxu0 0
        %526 = vmatprep.subr.bf16.mxu0 0
        %527 = vmatpush1.bf16.msra.mxu0 0
        %528 = vmatprep.mubr.bf16.mxu0 0
        %529 = vmatmul.mubr.bf16.gmra.mrb[0].mxu0 %v491
        %v530 = vpop.f32.mrb[0].mxu0
        %v531 = vadd.f32 0.0, %v530
        %v532 = vpop.f32.mrb[0].mxu0
        %v533 = vpop.f32.mrb[0].mxu0
        %v534 = vpop.f32.mrb[0].mxu0
        %535 = vdwg.mxu0
        %v536 = vadd.f32 %v481, %v531
        %s537 = scalar_lea.vmem %s3, 16
        %v538 = vld [vmem:[%s537] sm:$0xf]
        %539 = vrot.lane.b32.xlu0 %v325, 117
        %v540 = vpop.permute.xlu0 %539
        %541 = vrot.lane.b32.xlu0 %v326, 117
        %v542 = vpop.permute.xlu0 %541
        %vm543 = vcmask 957440
        %v544 = vsel %vm543, %v540, %v542
        %v546 = vsel %vm333, %v538, 0
        %v549 = vsel %vm337, %v544, 0
        %551 = vmatprep.subr.bf16.mxu0 0
        %552 = vmatpush1.bf16.msra.mxu0 %v549
        %553 = vmatprep.subr.bf16.mxu0 0
        %554 = vmatpush1.bf16.msra.mxu0 0
        %555 = vmatprep.subr.bf16.mxu0 0
        %556 = vmatpush1.bf16.msra.mxu0 0
        %557 = vmatprep.subr.bf16.mxu0 0
        %558 = vmatpush1.bf16.msra.mxu0 0
        %559 = vmatprep.subr.bf16.mxu0 0
        %560 = vmatpush1.bf16.msra.mxu0 0
        %561 = vmatprep.subr.bf16.mxu0 0
        %562 = vmatpush1.bf16.msra.mxu0 0
        %563 = vmatprep.subr.bf16.mxu0 0
        %564 = vmatpush1.bf16.msra.mxu0 0
        %565 = vmatprep.subr.bf16.mxu0 0
        %566 = vmatpush1.bf16.msra.mxu0 0
        %567 = vmatprep.subr.bf16.mxu0 0
        %568 = vmatpush1.bf16.msra.mxu0 0
        %569 = vmatprep.subr.bf16.mxu0 0
        %570 = vmatpush1.bf16.msra.mxu0 0
        %571 = vmatprep.subr.bf16.mxu0 0
        %572 = vmatpush1.bf16.msra.mxu0 0
        %573 = vmatprep.subr.bf16.mxu0 0
        %574 = vmatpush1.bf16.msra.mxu0 0
        %575 = vmatprep.subr.bf16.mxu0 0
        %576 = vmatpush1.bf16.msra.mxu0 0
        %577 = vmatprep.subr.bf16.mxu0 0
        %578 = vmatpush1.bf16.msra.mxu0 0
        %579 = vmatprep.subr.bf16.mxu0 0
        %580 = vmatpush1.bf16.msra.mxu0 0
        %581 = vmatprep.subr.bf16.mxu0 0
        %582 = vmatpush1.bf16.msra.mxu0 0
        %583 = vmatprep.mubr.bf16.mxu0 0
        %584 = vmatmul.mubr.bf16.gmra.mrb[0].mxu0 %v546
        %v585 = vpop.f32.mrb[0].mxu0
        %v586 = vadd.f32 0.0, %v585
        %v587 = vpop.f32.mrb[0].mxu0
        %v588 = vpop.f32.mrb[0].mxu0
        %v589 = vpop.f32.mrb[0].mxu0
        %590 = vdwg.mxu0
        %v591 = vadd.f32 %v536, %v586
        %s592 = scalar_lea.vmem %s3, 20
        %v593 = vld [vmem:[%s592] sm:$0xf]
        %594 = vrot.lane.b32.xlu0 %v325, 116
        %v595 = vpop.permute.xlu0 %594
        %596 = vrot.lane.b32.xlu0 %v326, 116
        %v597 = vpop.permute.xlu0 %596
        %vm598 = vcmask 949248
        %v599 = vsel %vm598, %v595, %v597
        %v601 = vsel %vm333, %v593, 0
        %v604 = vsel %vm337, %v599, 0
        %606 = vmatprep.subr.bf16.mxu0 0
        %607 = vmatpush1.bf16.msra.mxu0 %v604
        %608 = vmatprep.subr.bf16.mxu0 0
        %609 = vmatpush1.bf16.msra.mxu0 0
        %610 = vmatprep.subr.bf16.mxu0 0
        %611 = vmatpush1.bf16.msra.mxu0 0
        %612 = vmatprep.subr.bf16.mxu0 0
        %613 = vmatpush1.bf16.msra.mxu0 0
        %614 = vmatprep.subr.bf16.mxu0 0
        %615 = vmatpush1.bf16.msra.mxu0 0
        %616 = vmatprep.subr.bf16.mxu0 0
        %617 = vmatpush1.bf16.msra.mxu0 0
        %618 = vmatprep.subr.bf16.mxu0 0
        %619 = vmatpush1.bf16.msra.mxu0 0
        %620 = vmatprep.subr.bf16.mxu0 0
        %621 = vmatpush1.bf16.msra.mxu0 0
        %622 = vmatprep.subr.bf16.mxu0 0
        %623 = vmatpush1.bf16.msra.mxu0 0
        %624 = vmatprep.subr.bf16.mxu0 0
        %625 = vmatpush1.bf16.msra.mxu0 0
        %626 = vmatprep.subr.bf16.mxu0 0
        %627 = vmatpush1.bf16.msra.mxu0 0
        %628 = vmatprep.subr.bf16.mxu0 0
        %629 = vmatpush1.bf16.msra.mxu0 0
        %630 = vmatprep.subr.bf16.mxu0 0
        %631 = vmatpush1.bf16.msra.mxu0 0
        %632 = vmatprep.subr.bf16.mxu0 0
        %633 = vmatpush1.bf16.msra.mxu0 0
        %634 = vmatprep.subr.bf16.mxu0 0
        %635 = vmatpush1.bf16.msra.mxu0 0
        %636 = vmatprep.subr.bf16.mxu0 0
        %637 = vmatpush1.bf16.msra.mxu0 0
        %638 = vmatprep.mubr.bf16.mxu0 0
        %639 = vmatmul.mubr.bf16.gmra.mrb[0].mxu0 %v601
        %v640 = vpop.f32.mrb[0].mxu0
        %v641 = vadd.f32 0.0, %v640
        %v642 = vpop.f32.mrb[0].mxu0
        %v643 = vpop.f32.mrb[0].mxu0
        %v644 = vpop.f32.mrb[0].mxu0
        %645 = vdwg.mxu0
        %v646 = vadd.f32 %v591, %v641
        %s647 = scalar_lea.vmem %s3, 24
        %v648 = vld [vmem:[%s647] sm:$0xf]
        %649 = vrot.lane.b32.xlu0 %v325, 108
        %v650 = vpop.permute.xlu0 %649
        %651 = vrot.lane.b32.xlu0 %v326, 108
        %v652 = vpop.permute.xlu0 %651
        %vm653 = vcmask 883712
        %v654 = vsel %vm653, %v650, %v652
        %v656 = vsel %vm333, %v648, 0
        %v659 = vsel %vm337, %v654, 0
        %661 = vmatprep.subr.bf16.mxu0 0
        %662 = vmatpush1.bf16.msra.mxu0 %v659
        %663 = vmatprep.subr.bf16.mxu0 0
        %664 = vmatpush1.bf16.msra.mxu0 0
        %665 = vmatprep.subr.bf16.mxu0 0
        %666 = vmatpush1.bf16.msra.mxu0 0
        %667 = vmatprep.subr.bf16.mxu0 0
        %668 = vmatpush1.bf16.msra.mxu0 0
        %669 = vmatprep.subr.bf16.mxu0 0
        %670 = vmatpush1.bf16.msra.mxu0 0
        %671 = vmatprep.subr.bf16.mxu0 0
        %672 = vmatpush1.bf16.msra.mxu0 0
        %673 = vmatprep.subr.bf16.mxu0 0
        %674 = vmatpush1.bf16.msra.mxu0 0
        %675 = vmatprep.subr.bf16.mxu0 0
        %676 = vmatpush1.bf16.msra.mxu0 0
        %677 = vmatprep.subr.bf16.mxu0 0
        %678 = vmatpush1.bf16.msra.mxu0 0
        %679 = vmatprep.subr.bf16.mxu0 0
        %680 = vmatpush1.bf16.msra.mxu0 0
        %681 = vmatprep.subr.bf16.mxu0 0
        %682 = vmatpush1.bf16.msra.mxu0 0
        %683 = vmatprep.subr.bf16.mxu0 0
        %684 = vmatpush1.bf16.msra.mxu0 0
        %685 = vmatprep.subr.bf16.mxu0 0
        %686 = vmatpush1.bf16.msra.mxu0 0
        %687 = vmatprep.subr.bf16.mxu0 0
        %688 = vmatpush1.bf16.msra.mxu0 0
        %689 = vmatprep.subr.bf16.mxu0 0
        %690 = vmatpush1.bf16.msra.mxu0 0
        %691 = vmatprep.subr.bf16.mxu0 0
        %692 = vmatpush1.bf16.msra.mxu0 0
        %693 = vmatprep.mubr.bf16.mxu0 0
        %694 = vmatmul.mubr.bf16.gmra.mrb[0].mxu0 %v656
        %v695 = vpop.f32.mrb[0].mxu0
        %v696 = vadd.f32 0.0, %v695
        %v697 = vpop.f32.mrb[0].mxu0
        %v698 = vpop.f32.mrb[0].mxu0
        %v699 = vpop.f32.mrb[0].mxu0
        %700 = vdwg.mxu0
        %v701 = vadd.f32 %v646, %v696
        %s702 = scalar_lea.vmem %s3, 28
        %v703 = vld [vmem:[%s702] sm:$0xf]
        %704 = vrot.lane.b32.xlu0 %v325, 107
        %v705 = vpop.permute.xlu0 %704
        %706 = vrot.lane.b32.xlu0 %v326, 107
        %v707 = vpop.permute.xlu0 %706
        %vm708 = vcmask 875520
        %v709 = vsel %vm708, %v705, %v707
        %v711 = vsel %vm333, %v703, 0
        %v714 = vsel %vm337, %v709, 0
        %716 = vmatprep.subr.bf16.mxu0 0
        %717 = vmatpush1.bf16.msra.mxu0 %v714
        %718 = vmatprep.subr.bf16.mxu0 0
        %719 = vmatpush1.bf16.msra.mxu0 0
        %720 = vmatprep.subr.bf16.mxu0 0
        %721 = vmatpush1.bf16.msra.mxu0 0
        %722 = vmatprep.subr.bf16.mxu0 0
        %723 = vmatpush1.bf16.msra.mxu0 0
        %724 = vmatprep.subr.bf16.mxu0 0
        %725 = vmatpush1.bf16.msra.mxu0 0
        %726 = vmatprep.subr.bf16.mxu0 0
        %727 = vmatpush1.bf16.msra.mxu0 0
        %728 = vmatprep.subr.bf16.mxu0 0
        %729 = vmatpush1.bf16.msra.mxu0 0
        %730 = vmatprep.subr.bf16.mxu0 0
        %731 = vmatpush1.bf16.msra.mxu0 0
        %732 = vmatprep.subr.bf16.mxu0 0
        %733 = vmatpush1.bf16.msra.mxu0 0
        %734 = vmatprep.subr.bf16.mxu0 0
        %735 = vmatpush1.bf16.msra.mxu0 0
        %736 = vmatprep.subr.bf16.mxu0 0
        %737 = vmatpush1.bf16.msra.mxu0 0
        %738 = vmatprep.subr.bf16.mxu0 0
        %739 = vmatpush1.bf16.msra.mxu0 0
        %740 = vmatprep.subr.bf16.mxu0 0
        %741 = vmatpush1.bf16.msra.mxu0 0
        %742 = vmatprep.subr.bf16.mxu0 0
        %743 = vmatpush1.bf16.msra.mxu0 0
        %744 = vmatprep.subr.bf16.mxu0 0
        %745 = vmatpush1.bf16.msra.mxu0 0
        %746 = vmatprep.subr.bf16.mxu0 0
        %747 = vmatpush1.bf16.msra.mxu0 0
        %748 = vmatprep.mubr.bf16.mxu0 0
        %749 = vmatmul.mubr.bf16.gmra.mrb[0].mxu0 %v711
        %v750 = vpop.f32.mrb[0].mxu0
        %v751 = vadd.f32 0.0, %v750
        %v752 = vpop.f32.mrb[0].mxu0
        %v753 = vpop.f32.mrb[0].mxu0
        %v754 = vpop.f32.mrb[0].mxu0
        %755 = vdwg.mxu0
        %v756 = vadd.f32 %v701, %v751
        %s757 = scalar_lea.vmem %s3, 32
        %v758 = vld [vmem:[%s757] sm:$0xf]
        %759 = vrot.lane.b32.xlu0 %v325, 106
        %v760 = vpop.permute.xlu0 %759
        %761 = vrot.lane.b32.xlu0 %v326, 106
        %v762 = vpop.permute.xlu0 %761
        %vm763 = vcmask 867328
        %v764 = vsel %vm763, %v760, %v762
        %v766 = vsel %vm333, %v758, 0
        %v769 = vsel %vm337, %v764, 0
        %771 = vmatprep.subr.bf16.mxu0 0
        %772 = vmatpush1.bf16.msra.mxu0 %v769
        %773 = vmatprep.subr.bf16.mxu0 0
        %774 = vmatpush1.bf16.msra.mxu0 0
        %775 = vmatprep.subr.bf16.mxu0 0
        %776 = vmatpush1.bf16.msra.mxu0 0
        %777 = vmatprep.subr.bf16.mxu0 0
        %778 = vmatpush1.bf16.msra.mxu0 0
        %779 = vmatprep.subr.bf16.mxu0 0
        %780 = vmatpush1.bf16.msra.mxu0 0
        %781 = vmatprep.subr.bf16.mxu0 0
        %782 = vmatpush1.bf16.msra.mxu0 0
        %783 = vmatprep.subr.bf16.mxu0 0
        %784 = vmatpush1.bf16.msra.mxu0 0
        %785 = vmatprep.subr.bf16.mxu0 0
        %786 = vmatpush1.bf16.msra.mxu0 0
        %787 = vmatprep.subr.bf16.mxu0 0
        %788 = vmatpush1.bf16.msra.mxu0 0
        %789 = vmatprep.subr.bf16.mxu0 0
        %790 = vmatpush1.bf16.msra.mxu0 0
        %791 = vmatprep.subr.bf16.mxu0 0
        %792 = vmatpush1.bf16.msra.mxu0 0
        %793 = vmatprep.subr.bf16.mxu0 0
        %794 = vmatpush1.bf16.msra.mxu0 0
        %795 = vmatprep.subr.bf16.mxu0 0
        %796 = vmatpush1.bf16.msra.mxu0 0
        %797 = vmatprep.subr.bf16.mxu0 0
        %798 = vmatpush1.bf16.msra.mxu0 0
        %799 = vmatprep.subr.bf16.mxu0 0
        %800 = vmatpush1.bf16.msra.mxu0 0
        %801 = vmatprep.subr.bf16.mxu0 0
        %802 = vmatpush1.bf16.msra.mxu0 0
        %803 = vmatprep.mubr.bf16.mxu0 0
        %804 = vmatmul.mubr.bf16.gmra.mrb[0].mxu0 %v766
        %v805 = vpop.f32.mrb[0].mxu0
        %v806 = vadd.f32 0.0, %v805
        %v807 = vpop.f32.mrb[0].mxu0
        %v808 = vpop.f32.mrb[0].mxu0
        %v809 = vpop.f32.mrb[0].mxu0
        %810 = vdwg.mxu0
        %v811 = vadd.f32 %v756, %v806
        %s812 = scalar_lea.vmem %s3, 36
        %v813 = vld [vmem:[%s812] sm:$0xf]
        %v815 = vsel %vm333, %v813, 0
        %v818 = vsel %vm337, %v313, 0
        %820 = vmatprep.subr.bf16.mxu0 0
        %821 = vmatpush1.bf16.msra.mxu0 %v818
        %822 = vmatprep.subr.bf16.mxu0 0
        %823 = vmatpush1.bf16.msra.mxu0 0
        %824 = vmatprep.subr.bf16.mxu0 0
        %825 = vmatpush1.bf16.msra.mxu0 0
        %826 = vmatprep.subr.bf16.mxu0 0
        %827 = vmatpush1.bf16.msra.mxu0 0
        %828 = vmatprep.subr.bf16.mxu0 0
        %829 = vmatpush1.bf16.msra.mxu0 0
        %830 = vmatprep.subr.bf16.mxu0 0
        %831 = vmatpush1.bf16.msra.mxu0 0
        %832 = vmatprep.subr.bf16.mxu0 0
        %833 = vmatpush1.bf16.msra.mxu0 0
        %834 = vmatprep.subr.bf16.mxu0 0
        %835 = vmatpush1.bf16.msra.mxu0 0
        %836 = vmatprep.subr.bf16.mxu0 0
        %837 = vmatpush1.bf16.msra.mxu0 0
        %838 = vmatprep.subr.bf16.mxu0 0
        %839 = vmatpush1.bf16.msra.mxu0 0
        %840 = vmatprep.subr.bf16.mxu0 0
        %841 = vmatpush1.bf16.msra.mxu0 0
        %842 = vmatprep.subr.bf16.mxu0 0
        %843 = vmatpush1.bf16.msra.mxu0 0
        %844 = vmatprep.subr.bf16.mxu0 0
        %845 = vmatpush1.bf16.msra.mxu0 0
        %846 = vmatprep.subr.bf16.mxu0 0
        %847 = vmatpush1.bf16.msra.mxu0 0
        %848 = vmatprep.subr.bf16.mxu0 0
        %849 = vmatpush1.bf16.msra.mxu0 0
        %850 = vmatprep.subr.bf16.mxu0 0
        %851 = vmatpush1.bf16.msra.mxu0 0
        %852 = vmatprep.mubr.bf16.mxu0 0
        %853 = vmatmul.mubr.bf16.gmra.mrb[0].mxu0 %v815
        %v854 = vpop.f32.mrb[0].mxu0
        %v855 = vadd.f32 0.0, %v854
        %v856 = vpop.f32.mrb[0].mxu0
        %v857 = vpop.f32.mrb[0].mxu0
        %v858 = vpop.f32.mrb[0].mxu0
        %859 = vdwg.mxu0
        %v860 = vadd.f32 %v811, %v855
        %s861 = scalar_lea.vmem %s3, 40
        %v862 = vld [vmem:[%s861] sm:$0xf]
        %v865 = vunpack.c.l.s4 1983009808
        %v866 = vunpack.c.0.s8 %v865
        %v867 = vlaneseq
        %v868 = vshrl.u32 %v867, 7
        %v869 = vsub.s32 %v866, %v868
        %v870 = vrot.slane %v313, %v869
        %v871 = vcombine.high %v870, %v870
        %872 = vrot.lane.b32.xlu0 %v870, 127
        %v873 = vpop.permute.xlu0 %872
        %874 = vrot.lane.b32.xlu0 %v871, 127
        %v875 = vpop.permute.xlu0 %874
        %v876 = vsel %vm331, %v873, %v875
        %v878 = vsel %vm333, %v862, 0
        %v881 = vsel %vm337, %v876, 0
        %883 = vmatprep.subr.bf16.mxu0 0
        %884 = vmatpush1.bf16.msra.mxu0 %v881
        %885 = vmatprep.subr.bf16.mxu0 0
        %886 = vmatpush1.bf16.msra.mxu0 0
        %887 = vmatprep.subr.bf16.mxu0 0
        %888 = vmatpush1.bf16.msra.mxu0 0
        %889 = vmatprep.subr.bf16.mxu0 0
        %890 = vmatpush1.bf16.msra.mxu0 0
        %891 = vmatprep.subr.bf16.mxu0 0
        %892 = vmatpush1.bf16.msra.mxu0 0
        %893 = vmatprep.subr.bf16.mxu0 0
        %894 = vmatpush1.bf16.msra.mxu0 0
        %895 = vmatprep.subr.bf16.mxu0 0
        %896 = vmatpush1.bf16.msra.mxu0 0
        %897 = vmatprep.subr.bf16.mxu0 0
        %898 = vmatpush1.bf16.msra.mxu0 0
        %899 = vmatprep.subr.bf16.mxu0 0
        %900 = vmatpush1.bf16.msra.mxu0 0
        %901 = vmatprep.subr.bf16.mxu0 0
        %902 = vmatpush1.bf16.msra.mxu0 0
        %903 = vmatprep.subr.bf16.mxu0 0
        %904 = vmatpush1.bf16.msra.mxu0 0
        %905 = vmatprep.subr.bf16.mxu0 0
        %906 = vmatpush1.bf16.msra.mxu0 0
        %907 = vmatprep.subr.bf16.mxu0 0
        %908 = vmatpush1.bf16.msra.mxu0 0
        %909 = vmatprep.subr.bf16.mxu0 0
        %910 = vmatpush1.bf16.msra.mxu0 0
        %911 = vmatprep.subr.bf16.mxu0 0
        %912 = vmatpush1.bf16.msra.mxu0 0
        %913 = vmatprep.subr.bf16.mxu0 0
        %914 = vmatpush1.bf16.msra.mxu0 0
        %915 = vmatprep.mubr.bf16.mxu0 0
        %916 = vmatmul.mubr.bf16.gmra.mrb[0].mxu0 %v878
        %v917 = vpop.f32.mrb[0].mxu0
        %v918 = vadd.f32 0.0, %v917
        %v919 = vpop.f32.mrb[0].mxu0
        %v920 = vpop.f32.mrb[0].mxu0
        %v921 = vpop.f32.mrb[0].mxu0
        %922 = vdwg.mxu0
        %v923 = vadd.f32 %v860, %v918
        %s924 = scalar_lea.vmem %s3, 44
        %v925 = vld [vmem:[%s924] sm:$0xf]
        %926 = vrot.lane.b32.xlu0 %v870, 126
        %v927 = vpop.permute.xlu0 %926
        %928 = vrot.lane.b32.xlu0 %v871, 126
        %v929 = vpop.permute.xlu0 %928
        %v930 = vsel %vm433, %v927, %v929
        %v932 = vsel %vm333, %v925, 0
        %v935 = vsel %vm337, %v930, 0
        %937 = vmatprep.subr.bf16.mxu0 0
        %938 = vmatpush1.bf16.msra.mxu0 %v935
        %939 = vmatprep.subr.bf16.mxu0 0
        %940 = vmatpush1.bf16.msra.mxu0 0
        %941 = vmatprep.subr.bf16.mxu0 0
        %942 = vmatpush1.bf16.msra.mxu0 0
        %943 = vmatprep.subr.bf16.mxu0 0
        %944 = vmatpush1.bf16.msra.mxu0 0
        %945 = vmatprep.subr.bf16.mxu0 0
        %946 = vmatpush1.bf16.msra.mxu0 0
        %947 = vmatprep.subr.bf16.mxu0 0
        %948 = vmatpush1.bf16.msra.mxu0 0
        %949 = vmatprep.subr.bf16.mxu0 0
        %950 = vmatpush1.bf16.msra.mxu0 0
        %951 = vmatprep.subr.bf16.mxu0 0
        %952 = vmatpush1.bf16.msra.mxu0 0
        %953 = vmatprep.subr.bf16.mxu0 0
        %954 = vmatpush1.bf16.msra.mxu0 0
        %955 = vmatprep.subr.bf16.mxu0 0
        %956 = vmatpush1.bf16.msra.mxu0 0
        %957 = vmatprep.subr.bf16.mxu0 0
        %958 = vmatpush1.bf16.msra.mxu0 0
        %959 = vmatprep.subr.bf16.mxu0 0
        %960 = vmatpush1.bf16.msra.mxu0 0
        %961 = vmatprep.subr.bf16.mxu0 0
        %962 = vmatpush1.bf16.msra.mxu0 0
        %963 = vmatprep.subr.bf16.mxu0 0
        %964 = vmatpush1.bf16.msra.mxu0 0
        %965 = vmatprep.subr.bf16.mxu0 0
        %966 = vmatpush1.bf16.msra.mxu0 0
        %967 = vmatprep.subr.bf16.mxu0 0
        %968 = vmatpush1.bf16.msra.mxu0 0
        %969 = vmatprep.mubr.bf16.mxu0 0
        %970 = vmatmul.mubr.bf16.gmra.mrb[0].mxu0 %v932
        %v971 = vpop.f32.mrb[0].mxu0
        %v972 = vadd.f32 0.0, %v971
        %v973 = vpop.f32.mrb[0].mxu0
        %v974 = vpop.f32.mrb[0].mxu0
        %v975 = vpop.f32.mrb[0].mxu0
        %976 = vdwg.mxu0
        %v977 = vadd.f32 %v923, %v972
        %s978 = scalar_lea.vmem %s3, 48
        %v979 = vld [vmem:[%s978] sm:$0xf]
        %980 = vrot.lane.b32.xlu0 %v870, 118
        %v981 = vpop.permute.xlu0 %980
        %982 = vrot.lane.b32.xlu0 %v871, 118
        %v983 = vpop.permute.xlu0 %982
        %v984 = vsel %vm488, %v981, %v983
        %v986 = vsel %vm333, %v979, 0
        %v989 = vsel %vm337, %v984, 0
        %991 = vmatprep.subr.bf16.mxu0 0
        %992 = vmatpush1.bf16.msra.mxu0 %v989
        %993 = vmatprep.subr.bf16.mxu0 0
        %994 = vmatpush1.bf16.msra.mxu0 0
        %995 = vmatprep.subr.bf16.mxu0 0
        %996 = vmatpush1.bf16.msra.mxu0 0
        %997 = vmatprep.subr.bf16.mxu0 0
        %998 = vmatpush1.bf16.msra.mxu0 0
        %999 = vmatprep.subr.bf16.mxu0 0
        %1000 = vmatpush1.bf16.msra.mxu0 0
        %1001 = vmatprep.subr.bf16.mxu0 0
        %1002 = vmatpush1.bf16.msra.mxu0 0
        %1003 = vmatprep.subr.bf16.mxu0 0
        %1004 = vmatpush1.bf16.msra.mxu0 0
        %1005 = vmatprep.subr.bf16.mxu0 0
        %1006 = vmatpush1.bf16.msra.mxu0 0
        %1007 = vmatprep.subr.bf16.mxu0 0
        %1008 = vmatpush1.bf16.msra.mxu0 0
        %1009 = vmatprep.subr.bf16.mxu0 0
        %1010 = vmatpush1.bf16.msra.mxu0 0
        %1011 = vmatprep.subr.bf16.mxu0 0
        %1012 = vmatpush1.bf16.msra.mxu0 0
        %1013 = vmatprep.subr.bf16.mxu0 0
        %1014 = vmatpush1.bf16.msra.mxu0 0
        %1015 = vmatprep.subr.bf16.mxu0 0
        %1016 = vmatpush1.bf16.msra.mxu0 0
        %1017 = vmatprep.subr.bf16.mxu0 0
        %1018 = vmatpush1.bf16.msra.mxu0 0
        %1019 = vmatprep.subr.bf16.mxu0 0
        %1020 = vmatpush1.bf16.msra.mxu0 0
        %1021 = vmatprep.subr.bf16.mxu0 0
        %1022 = vmatpush1.bf16.msra.mxu0 0
        %1023 = vmatprep.mubr.bf16.mxu0 0
        %1024 = vmatmul.mubr.bf16.gmra.mrb[0].mxu0 %v986
        %v1025 = vpop.f32.mrb[0].mxu0
        %v1026 = vadd.f32 0.0, %v1025
        %v1027 = vpop.f32.mrb[0].mxu0
        %v1028 = vpop.f32.mrb[0].mxu0
        %v1029 = vpop.f32.mrb[0].mxu0
        %1030 = vdwg.mxu0
        %v1031 = vadd.f32 %v977, %v1026
        %s1032 = scalar_lea.vmem %s3, 52
        %v1033 = vld [vmem:[%s1032] sm:$0xf]
        %1034 = vrot.lane.b32.xlu0 %v870, 117
        %v1035 = vpop.permute.xlu0 %1034
        %1036 = vrot.lane.b32.xlu0 %v871, 117
        %v1037 = vpop.permute.xlu0 %1036
        %v1038 = vsel %vm543, %v1035, %v1037
        %v1040 = vsel %vm333, %v1033, 0
        %v1043 = vsel %vm337, %v1038, 0
        %1045 = vmatprep.subr.bf16.mxu0 0
        %1046 = vmatpush1.bf16.msra.mxu0 %v1043
        %1047 = vmatprep.subr.bf16.mxu0 0
        %1048 = vmatpush1.bf16.msra.mxu0 0
        %1049 = vmatprep.subr.bf16.mxu0 0
        %1050 = vmatpush1.bf16.msra.mxu0 0
        %1051 = vmatprep.subr.bf16.mxu0 0
        %1052 = vmatpush1.bf16.msra.mxu0 0
        %1053 = vmatprep.subr.bf16.mxu0 0
        %1054 = vmatpush1.bf16.msra.mxu0 0
        %1055 = vmatprep.subr.bf16.mxu0 0
        %1056 = vmatpush1.bf16.msra.mxu0 0
        %1057 = vmatprep.subr.bf16.mxu0 0
        %1058 = vmatpush1.bf16.msra.mxu0 0
        %1059 = vmatprep.subr.bf16.mxu0 0
        %1060 = vmatpush1.bf16.msra.mxu0 0
        %1061 = vmatprep.subr.bf16.mxu0 0
        %1062 = vmatpush1.bf16.msra.mxu0 0
        %1063 = vmatprep.subr.bf16.mxu0 0
        %1064 = vmatpush1.bf16.msra.mxu0 0
        %1065 = vmatprep.subr.bf16.mxu0 0
        %1066 = vmatpush1.bf16.msra.mxu0 0
        %1067 = vmatprep.subr.bf16.mxu0 0
        %1068 = vmatpush1.bf16.msra.mxu0 0
        %1069 = vmatprep.subr.bf16.mxu0 0
        %1070 = vmatpush1.bf16.msra.mxu0 0
        %1071 = vmatprep.subr.bf16.mxu0 0
        %1072 = vmatpush1.bf16.msra.mxu0 0
        %1073 = vmatprep.subr.bf16.mxu0 0
        %1074 = vmatpush1.bf16.msra.mxu0 0
        %1075 = vmatprep.subr.bf16.mxu0 0
        %1076 = vmatpush1.bf16.msra.mxu0 0
        %1077 = vmatprep.mubr.bf16.mxu0 0
        %1078 = vmatmul.mubr.bf16.gmra.mrb[0].mxu0 %v1040
        %v1079 = vpop.f32.mrb[0].mxu0
        %v1080 = vadd.f32 0.0, %v1079
        %v1081 = vpop.f32.mrb[0].mxu0
        %v1082 = vpop.f32.mrb[0].mxu0
        %v1083 = vpop.f32.mrb[0].mxu0
        %1084 = vdwg.mxu0
        %v1085 = vadd.f32 %v1031, %v1080
        %s1086 = scalar_lea.vmem %s3, 56
        %v1087 = vld [vmem:[%s1086] sm:$0xf]
        %1088 = vrot.lane.b32.xlu0 %v870, 116
        %v1089 = vpop.permute.xlu0 %1088
        %1090 = vrot.lane.b32.xlu0 %v871, 116
        %v1091 = vpop.permute.xlu0 %1090
        %v1092 = vsel %vm598, %v1089, %v1091
        %v1094 = vsel %vm333, %v1087, 0
        %v1097 = vsel %vm337, %v1092, 0
        %1099 = vmatprep.subr.bf16.mxu0 0
        %1100 = vmatpush1.bf16.msra.mxu0 %v1097
        %1101 = vmatprep.subr.bf16.mxu0 0
        %1102 = vmatpush1.bf16.msra.mxu0 0
        %1103 = vmatprep.subr.bf16.mxu0 0
        %1104 = vmatpush1.bf16.msra.mxu0 0
        %1105 = vmatprep.subr.bf16.mxu0 0
        %1106 = vmatpush1.bf16.msra.mxu0 0
        %1107 = vmatprep.subr.bf16.mxu0 0
        %1108 = vmatpush1.bf16.msra.mxu0 0
        %1109 = vmatprep.subr.bf16.mxu0 0
        %1110 = vmatpush1.bf16.msra.mxu0 0
        %1111 = vmatprep.subr.bf16.mxu0 0
        %1112 = vmatpush1.bf16.msra.mxu0 0
        %1113 = vmatprep.subr.bf16.mxu0 0
        %1114 = vmatpush1.bf16.msra.mxu0 0
        %1115 = vmatprep.subr.bf16.mxu0 0
        %1116 = vmatpush1.bf16.msra.mxu0 0
        %1117 = vmatprep.subr.bf16.mxu0 0
        %1118 = vmatpush1.bf16.msra.mxu0 0
        %1119 = vmatprep.subr.bf16.mxu0 0
        %1120 = vmatpush1.bf16.msra.mxu0 0
        %1121 = vmatprep.subr.bf16.mxu0 0
        %1122 = vmatpush1.bf16.msra.mxu0 0
        %1123 = vmatprep.subr.bf16.mxu0 0
        %1124 = vmatpush1.bf16.msra.mxu0 0
        %1125 = vmatprep.subr.bf16.mxu0 0
        %1126 = vmatpush1.bf16.msra.mxu0 0
        %1127 = vmatprep.subr.bf16.mxu0 0
        %1128 = vmatpush1.bf16.msra.mxu0 0
        %1129 = vmatprep.subr.bf16.mxu0 0
        %1130 = vmatpush1.bf16.msra.mxu0 0
        %1131 = vmatprep.mubr.bf16.mxu0 0
        %1132 = vmatmul.mubr.bf16.gmra.mrb[0].mxu0 %v1094
        %v1133 = vpop.f32.mrb[0].mxu0
        %v1134 = vadd.f32 0.0, %v1133
        %v1135 = vpop.f32.mrb[0].mxu0
        %v1136 = vpop.f32.mrb[0].mxu0
        %v1137 = vpop.f32.mrb[0].mxu0
        %1138 = vdwg.mxu0
        %v1139 = vadd.f32 %v1085, %v1134
        %s1140 = scalar_lea.vmem %s3, 60
        %v1141 = vld [vmem:[%s1140] sm:$0xf]
        %1142 = vrot.lane.b32.xlu0 %v870, 108
        %v1143 = vpop.permute.xlu0 %1142
        %1144 = vrot.lane.b32.xlu0 %v871, 108
        %v1145 = vpop.permute.xlu0 %1144
        %v1146 = vsel %vm653, %v1143, %v1145
        %v1148 = vsel %vm333, %v1141, 0
        %v1151 = vsel %vm337, %v1146, 0
        %1153 = vmatprep.subr.bf16.mxu0 0
        %1154 = vmatpush1.bf16.msra.mxu0 %v1151
        %1155 = vmatprep.subr.bf16.mxu0 0
        %1156 = vmatpush1.bf16.msra.mxu0 0
        %1157 = vmatprep.subr.bf16.mxu0 0
        %1158 = vmatpush1.bf16.msra.mxu0 0
        %1159 = vmatprep.subr.bf16.mxu0 0
        %1160 = vmatpush1.bf16.msra.mxu0 0
        %1161 = vmatprep.subr.bf16.mxu0 0
        %1162 = vmatpush1.bf16.msra.mxu0 0
        %1163 = vmatprep.subr.bf16.mxu0 0
        %1164 = vmatpush1.bf16.msra.mxu0 0
        %1165 = vmatprep.subr.bf16.mxu0 0
        %1166 = vmatpush1.bf16.msra.mxu0 0
        %1167 = vmatprep.subr.bf16.mxu0 0
        %1168 = vmatpush1.bf16.msra.mxu0 0
        %1169 = vmatprep.subr.bf16.mxu0 0
        %1170 = vmatpush1.bf16.msra.mxu0 0
        %1171 = vmatprep.subr.bf16.mxu0 0
        %1172 = vmatpush1.bf16.msra.mxu0 0
        %1173 = vmatprep.subr.bf16.mxu0 0
        %1174 = vmatpush1.bf16.msra.mxu0 0
        %1175 = vmatprep.subr.bf16.mxu0 0
        %1176 = vmatpush1.bf16.msra.mxu0 0
        %1177 = vmatprep.subr.bf16.mxu0 0
        %1178 = vmatpush1.bf16.msra.mxu0 0
        %1179 = vmatprep.subr.bf16.mxu0 0
        %1180 = vmatpush1.bf16.msra.mxu0 0
        %1181 = vmatprep.subr.bf16.mxu0 0
        %1182 = vmatpush1.bf16.msra.mxu0 0
        %1183 = vmatprep.subr.bf16.mxu0 0
        %1184 = vmatpush1.bf16.msra.mxu0 0
        %1185 = vmatprep.mubr.bf16.mxu0 0
        %1186 = vmatmul.mubr.bf16.gmra.mrb[0].mxu0 %v1148
        %v1187 = vpop.f32.mrb[0].mxu0
        %v1188 = vadd.f32 0.0, %v1187
        %v1189 = vpop.f32.mrb[0].mxu0
        %v1190 = vpop.f32.mrb[0].mxu0
        %v1191 = vpop.f32.mrb[0].mxu0
        %1192 = vdwg.mxu0
        %v1193 = vadd.f32 %v1139, %v1188
        %s1194 = scalar_lea.vmem %s3, 64
        %v1195 = vld [vmem:[%s1194] sm:$0xf]
        %1196 = vrot.lane.b32.xlu0 %v870, 107
        %v1197 = vpop.permute.xlu0 %1196
        %1198 = vrot.lane.b32.xlu0 %v871, 107
        %v1199 = vpop.permute.xlu0 %1198
        %v1200 = vsel %vm708, %v1197, %v1199
        %v1202 = vsel %vm333, %v1195, 0
        %v1205 = vsel %vm337, %v1200, 0
        %1207 = vmatprep.subr.bf16.mxu0 0
        %1208 = vmatpush1.bf16.msra.mxu0 %v1205
        %1209 = vmatprep.subr.bf16.mxu0 0
        %1210 = vmatpush1.bf16.msra.mxu0 0
        %1211 = vmatprep.subr.bf16.mxu0 0
        %1212 = vmatpush1.bf16.msra.mxu0 0
        %1213 = vmatprep.subr.bf16.mxu0 0
        %1214 = vmatpush1.bf16.msra.mxu0 0
        %1215 = vmatprep.subr.bf16.mxu0 0
        %1216 = vmatpush1.bf16.msra.mxu0 0
        %1217 = vmatprep.subr.bf16.mxu0 0
        %1218 = vmatpush1.bf16.msra.mxu0 0
        %1219 = vmatprep.subr.bf16.mxu0 0
        %1220 = vmatpush1.bf16.msra.mxu0 0
        %1221 = vmatprep.subr.bf16.mxu0 0
        %1222 = vmatpush1.bf16.msra.mxu0 0
        %1223 = vmatprep.subr.bf16.mxu0 0
        %1224 = vmatpush1.bf16.msra.mxu0 0
        %1225 = vmatprep.subr.bf16.mxu0 0
        %1226 = vmatpush1.bf16.msra.mxu0 0
        %1227 = vmatprep.subr.bf16.mxu0 0
        %1228 = vmatpush1.bf16.msra.mxu0 0
        %1229 = vmatprep.subr.bf16.mxu0 0
        %1230 = vmatpush1.bf16.msra.mxu0 0
        %1231 = vmatprep.subr.bf16.mxu0 0
        %1232 = vmatpush1.bf16.msra.mxu0 0
        %1233 = vmatprep.subr.bf16.mxu0 0
        %1234 = vmatpush1.bf16.msra.mxu0 0
        %1235 = vmatprep.subr.bf16.mxu0 0
        %1236 = vmatpush1.bf16.msra.mxu0 0
        %1237 = vmatprep.subr.bf16.mxu0 0
        %1238 = vmatpush1.bf16.msra.mxu0 0
        %1239 = vmatprep.mubr.bf16.mxu0 0
        %1240 = vmatmul.mubr.bf16.gmra.mrb[0].mxu0 %v1202
        %v1241 = vpop.f32.mrb[0].mxu0
        %v1242 = vadd.f32 0.0, %v1241
        %v1243 = vpop.f32.mrb[0].mxu0
        %v1244 = vpop.f32.mrb[0].mxu0
        %v1245 = vpop.f32.mrb[0].mxu0
        %1246 = vdwg.mxu0
        %v1247 = vadd.f32 %v1193, %v1242
        %s1248 = scalar_lea.vmem %s3, 68
        %v1249 = vld [vmem:[%s1248] sm:$0xf]
        %1250 = vrot.lane.b32.xlu0 %v870, 106
        %v1251 = vpop.permute.xlu0 %1250
        %1252 = vrot.lane.b32.xlu0 %v871, 106
        %v1253 = vpop.permute.xlu0 %1252
        %v1254 = vsel %vm763, %v1251, %v1253
        %v1256 = vsel %vm333, %v1249, 0
        %v1259 = vsel %vm337, %v1254, 0
        %1261 = vmatprep.subr.bf16.mxu0 0
        %1262 = vmatpush1.bf16.msra.mxu0 %v1259
        %1263 = vmatprep.subr.bf16.mxu0 0
        %1264 = vmatpush1.bf16.msra.mxu0 0
        %1265 = vmatprep.subr.bf16.mxu0 0
        %1266 = vmatpush1.bf16.msra.mxu0 0
        %1267 = vmatprep.subr.bf16.mxu0 0
        %1268 = vmatpush1.bf16.msra.mxu0 0
        %1269 = vmatprep.subr.bf16.mxu0 0
        %1270 = vmatpush1.bf16.msra.mxu0 0
        %1271 = vmatprep.subr.bf16.mxu0 0
        %1272 = vmatpush1.bf16.msra.mxu0 0
        %1273 = vmatprep.subr.bf16.mxu0 0
        %1274 = vmatpush1.bf16.msra.mxu0 0
        %1275 = vmatprep.subr.bf16.mxu0 0
        %1276 = vmatpush1.bf16.msra.mxu0 0
        %1277 = vmatprep.subr.bf16.mxu0 0
        %1278 = vmatpush1.bf16.msra.mxu0 0
        %1279 = vmatprep.subr.bf16.mxu0 0
        %1280 = vmatpush1.bf16.msra.mxu0 0
        %1281 = vmatprep.subr.bf16.mxu0 0
        %1282 = vmatpush1.bf16.msra.mxu0 0
        %1283 = vmatprep.subr.bf16.mxu0 0
        %1284 = vmatpush1.bf16.msra.mxu0 0
        %1285 = vmatprep.subr.bf16.mxu0 0
        %1286 = vmatpush1.bf16.msra.mxu0 0
        %1287 = vmatprep.subr.bf16.mxu0 0
        %1288 = vmatpush1.bf16.msra.mxu0 0
        %1289 = vmatprep.subr.bf16.mxu0 0
        %1290 = vmatpush1.bf16.msra.mxu0 0
        %1291 = vmatprep.subr.bf16.mxu0 0
        %1292 = vmatpush1.bf16.msra.mxu0 0
        %1293 = vmatprep.mubr.bf16.mxu0 0
        %1294 = vmatmul.mubr.bf16.gmra.mrb[0].mxu0 %v1256
        %v1295 = vpop.f32.mrb[0].mxu0
        %v1296 = vadd.f32 0.0, %v1295
        %v1297 = vpop.f32.mrb[0].mxu0
        %v1298 = vpop.f32.mrb[0].mxu0
        %v1299 = vpop.f32.mrb[0].mxu0
        %1300 = vdwg.mxu0
        %v1301 = vadd.f32 %v1247, %v1296
        %s1302 = scalar_lea.vmem %s3, 72
        %v1303 = vld [vmem:[%s1302] sm:$0xf]
        %v1305 = vsel %vm333, %v1303, 0
        %v1308 = vsel %vm337, %v314, 0
        %1310 = vmatprep.subr.bf16.mxu0 0
        %1311 = vmatpush1.bf16.msra.mxu0 %v1308
        %1312 = vmatprep.subr.bf16.mxu0 0
        %1313 = vmatpush1.bf16.msra.mxu0 0
        %1314 = vmatprep.subr.bf16.mxu0 0
        %1315 = vmatpush1.bf16.msra.mxu0 0
        %1316 = vmatprep.subr.bf16.mxu0 0
        %1317 = vmatpush1.bf16.msra.mxu0 0
        %1318 = vmatprep.subr.bf16.mxu0 0
        %1319 = vmatpush1.bf16.msra.mxu0 0
        %1320 = vmatprep.subr.bf16.mxu0 0
        %1321 = vmatpush1.bf16.msra.mxu0 0
        %1322 = vmatprep.subr.bf16.mxu0 0
        %1323 = vmatpush1.bf16.msra.mxu0 0
        %1324 = vmatprep.subr.bf16.mxu0 0
        %1325 = vmatpush1.bf16.msra.mxu0 0
        %1326 = vmatprep.subr.bf16.mxu0 0
        %1327 = vmatpush1.bf16.msra.mxu0 0
        %1328 = vmatprep.subr.bf16.mxu0 0
        %1329 = vmatpush1.bf16.msra.mxu0 0
        %1330 = vmatprep.subr.bf16.mxu0 0
        %1331 = vmatpush1.bf16.msra.mxu0 0
        %1332 = vmatprep.subr.bf16.mxu0 0
        %1333 = vmatpush1.bf16.msra.mxu0 0
        %1334 = vmatprep.subr.bf16.mxu0 0
        %1335 = vmatpush1.bf16.msra.mxu0 0
        %1336 = vmatprep.subr.bf16.mxu0 0
        %1337 = vmatpush1.bf16.msra.mxu0 0
        %1338 = vmatprep.subr.bf16.mxu0 0
        %1339 = vmatpush1.bf16.msra.mxu0 0
        %1340 = vmatprep.subr.bf16.mxu0 0
        %1341 = vmatpush1.bf16.msra.mxu0 0
        %1342 = vmatprep.mubr.bf16.mxu0 0
        %1343 = vmatmul.mubr.bf16.gmra.mrb[0].mxu0 %v1305
        %v1344 = vpop.f32.mrb[0].mxu0
        %v1345 = vadd.f32 0.0, %v1344
        %v1346 = vpop.f32.mrb[0].mxu0
        %v1347 = vpop.f32.mrb[0].mxu0
        %v1348 = vpop.f32.mrb[0].mxu0
        %1349 = vdwg.mxu0
        %v1350 = vadd.f32 %v1301, %v1345
        %s1351 = scalar_lea.vmem %s3, 76
        %v1352 = vld [vmem:[%s1351] sm:$0xf]
        %v1355 = vunpack.c.l.s4 1983009808
        %v1356 = vunpack.c.0.s8 %v1355
        %v1357 = vlaneseq
        %v1358 = vshrl.u32 %v1357, 7
        %v1359 = vsub.s32 %v1356, %v1358
        %v1360 = vrot.slane %v314, %v1359
        %v1361 = vcombine.high %v1360, %v1360
        %1362 = vrot.lane.b32.xlu0 %v1360, 127
        %v1363 = vpop.permute.xlu0 %1362
        %1364 = vrot.lane.b32.xlu0 %v1361, 127
        %v1365 = vpop.permute.xlu0 %1364
        %v1366 = vsel %vm331, %v1363, %v1365
        %v1368 = vsel %vm333, %v1352, 0
        %v1371 = vsel %vm337, %v1366, 0
        %1373 = vmatprep.subr.bf16.mxu0 0
        %1374 = vmatpush1.bf16.msra.mxu0 %v1371
        %1375 = vmatprep.subr.bf16.mxu0 0
        %1376 = vmatpush1.bf16.msra.mxu0 0
        %1377 = vmatprep.subr.bf16.mxu0 0
        %1378 = vmatpush1.bf16.msra.mxu0 0
        %1379 = vmatprep.subr.bf16.mxu0 0
        %1380 = vmatpush1.bf16.msra.mxu0 0
        %1381 = vmatprep.subr.bf16.mxu0 0
        %1382 = vmatpush1.bf16.msra.mxu0 0
        %1383 = vmatprep.subr.bf16.mxu0 0
        %1384 = vmatpush1.bf16.msra.mxu0 0
        %1385 = vmatprep.subr.bf16.mxu0 0
        %1386 = vmatpush1.bf16.msra.mxu0 0
        %1387 = vmatprep.subr.bf16.mxu0 0
        %1388 = vmatpush1.bf16.msra.mxu0 0
        %1389 = vmatprep.subr.bf16.mxu0 0
        %1390 = vmatpush1.bf16.msra.mxu0 0
        %1391 = vmatprep.subr.bf16.mxu0 0
        %1392 = vmatpush1.bf16.msra.mxu0 0
        %1393 = vmatprep.subr.bf16.mxu0 0
        %1394 = vmatpush1.bf16.msra.mxu0 0
        %1395 = vmatprep.subr.bf16.mxu0 0
        %1396 = vmatpush1.bf16.msra.mxu0 0
        %1397 = vmatprep.subr.bf16.mxu0 0
        %1398 = vmatpush1.bf16.msra.mxu0 0
        %1399 = vmatprep.subr.bf16.mxu0 0
        %1400 = vmatpush1.bf16.msra.mxu0 0
        %1401 = vmatprep.subr.bf16.mxu0 0
        %1402 = vmatpush1.bf16.msra.mxu0 0
        %1403 = vmatprep.subr.bf16.mxu0 0
        %1404 = vmatpush1.bf16.msra.mxu0 0
        %1405 = vmatprep.mubr.bf16.mxu0 0
        %1406 = vmatmul.mubr.bf16.gmra.mrb[0].mxu0 %v1368
        %v1407 = vpop.f32.mrb[0].mxu0
        %v1408 = vadd.f32 0.0, %v1407
        %v1409 = vpop.f32.mrb[0].mxu0
        %v1410 = vpop.f32.mrb[0].mxu0
        %v1411 = vpop.f32.mrb[0].mxu0
        %1412 = vdwg.mxu0
        %v1413 = vadd.f32 %v1350, %v1408
        %s1414 = scalar_lea.vmem %s3, 80
        %v1415 = vld [vmem:[%s1414] sm:$0xf]
        %1416 = vrot.lane.b32.xlu0 %v1360, 126
        %v1417 = vpop.permute.xlu0 %1416
        %1418 = vrot.lane.b32.xlu0 %v1361, 126
        %v1419 = vpop.permute.xlu0 %1418
        %v1420 = vsel %vm433, %v1417, %v1419
        %v1422 = vsel %vm333, %v1415, 0
        %v1425 = vsel %vm337, %v1420, 0
        %1427 = vmatprep.subr.bf16.mxu0 0
        %1428 = vmatpush1.bf16.msra.mxu0 %v1425
        %1429 = vmatprep.subr.bf16.mxu0 0
        %1430 = vmatpush1.bf16.msra.mxu0 0
        %1431 = vmatprep.subr.bf16.mxu0 0
        %1432 = vmatpush1.bf16.msra.mxu0 0
        %1433 = vmatprep.subr.bf16.mxu0 0
        %1434 = vmatpush1.bf16.msra.mxu0 0
        %1435 = vmatprep.subr.bf16.mxu0 0
        %1436 = vmatpush1.bf16.msra.mxu0 0
        %1437 = vmatprep.subr.bf16.mxu0 0
        %1438 = vmatpush1.bf16.msra.mxu0 0
        %1439 = vmatprep.subr.bf16.mxu0 0
        %1440 = vmatpush1.bf16.msra.mxu0 0
        %1441 = vmatprep.subr.bf16.mxu0 0
        %1442 = vmatpush1.bf16.msra.mxu0 0
        %1443 = vmatprep.subr.bf16.mxu0 0
        %1444 = vmatpush1.bf16.msra.mxu0 0
        %1445 = vmatprep.subr.bf16.mxu0 0
        %1446 = vmatpush1.bf16.msra.mxu0 0
        %1447 = vmatprep.subr.bf16.mxu0 0
        %1448 = vmatpush1.bf16.msra.mxu0 0
        %1449 = vmatprep.subr.bf16.mxu0 0
        %1450 = vmatpush1.bf16.msra.mxu0 0
        %1451 = vmatprep.subr.bf16.mxu0 0
        %1452 = vmatpush1.bf16.msra.mxu0 0
        %1453 = vmatprep.subr.bf16.mxu0 0
        %1454 = vmatpush1.bf16.msra.mxu0 0
        %1455 = vmatprep.subr.bf16.mxu0 0
        %1456 = vmatpush1.bf16.msra.mxu0 0
        %1457 = vmatprep.subr.bf16.mxu0 0
        %1458 = vmatpush1.bf16.msra.mxu0 0
        %1459 = vmatprep.mubr.bf16.mxu0 0
        %1460 = vmatmul.mubr.bf16.gmra.mrb[0].mxu0 %v1422
        %v1461 = vpop.f32.mrb[0].mxu0
        %v1462 = vadd.f32 0.0, %v1461
        %v1463 = vpop.f32.mrb[0].mxu0
        %v1464 = vpop.f32.mrb[0].mxu0
        %v1465 = vpop.f32.mrb[0].mxu0
        %1466 = vdwg.mxu0
        %v1467 = vadd.f32 %v1413, %v1462
        %s1468 = scalar_lea.vmem %s3, 84
        %v1469 = vld [vmem:[%s1468] sm:$0xf]
        %1470 = vrot.lane.b32.xlu0 %v1360, 118
        %v1471 = vpop.permute.xlu0 %1470
        %1472 = vrot.lane.b32.xlu0 %v1361, 118
        %v1473 = vpop.permute.xlu0 %1472
        %v1474 = vsel %vm488, %v1471, %v1473
        %v1476 = vsel %vm333, %v1469, 0
        %v1479 = vsel %vm337, %v1474, 0
        %1481 = vmatprep.subr.bf16.mxu0 0
        %1482 = vmatpush1.bf16.msra.mxu0 %v1479
        %1483 = vmatprep.subr.bf16.mxu0 0
        %1484 = vmatpush1.bf16.msra.mxu0 0
        %1485 = vmatprep.subr.bf16.mxu0 0
        %1486 = vmatpush1.bf16.msra.mxu0 0
        %1487 = vmatprep.subr.bf16.mxu0 0
        %1488 = vmatpush1.bf16.msra.mxu0 0
        %1489 = vmatprep.subr.bf16.mxu0 0
        %1490 = vmatpush1.bf16.msra.mxu0 0
        %1491 = vmatprep.subr.bf16.mxu0 0
        %1492 = vmatpush1.bf16.msra.mxu0 0
        %1493 = vmatprep.subr.bf16.mxu0 0
        %1494 = vmatpush1.bf16.msra.mxu0 0
        %1495 = vmatprep.subr.bf16.mxu0 0
        %1496 = vmatpush1.bf16.msra.mxu0 0
        %1497 = vmatprep.subr.bf16.mxu0 0
        %1498 = vmatpush1.bf16.msra.mxu0 0
        %1499 = vmatprep.subr.bf16.mxu0 0
        %1500 = vmatpush1.bf16.msra.mxu0 0
        %1501 = vmatprep.subr.bf16.mxu0 0
        %1502 = vmatpush1.bf16.msra.mxu0 0
        %1503 = vmatprep.subr.bf16.mxu0 0
        %1504 = vmatpush1.bf16.msra.mxu0 0
        %1505 = vmatprep.subr.bf16.mxu0 0
        %1506 = vmatpush1.bf16.msra.mxu0 0
        %1507 = vmatprep.subr.bf16.mxu0 0
        %1508 = vmatpush1.bf16.msra.mxu0 0
        %1509 = vmatprep.subr.bf16.mxu0 0
        %1510 = vmatpush1.bf16.msra.mxu0 0
        %1511 = vmatprep.subr.bf16.mxu0 0
        %1512 = vmatpush1.bf16.msra.mxu0 0
        %1513 = vmatprep.mubr.bf16.mxu0 0
        %1514 = vmatmul.mubr.bf16.gmra.mrb[0].mxu0 %v1476
        %v1515 = vpop.f32.mrb[0].mxu0
        %v1516 = vadd.f32 0.0, %v1515
        %v1517 = vpop.f32.mrb[0].mxu0
        %v1518 = vpop.f32.mrb[0].mxu0
        %v1519 = vpop.f32.mrb[0].mxu0
        %1520 = vdwg.mxu0
        %v1521 = vadd.f32 %v1467, %v1516
        %s1522 = scalar_lea.vmem %s3, 88
        %v1523 = vld [vmem:[%s1522] sm:$0xf]
        %1524 = vrot.lane.b32.xlu0 %v1360, 117
        %v1525 = vpop.permute.xlu0 %1524
        %1526 = vrot.lane.b32.xlu0 %v1361, 117
        %v1527 = vpop.permute.xlu0 %1526
        %v1528 = vsel %vm543, %v1525, %v1527
        %v1530 = vsel %vm333, %v1523, 0
        %v1533 = vsel %vm337, %v1528, 0
        %1535 = vmatprep.subr.bf16.mxu0 0
        %1536 = vmatpush1.bf16.msra.mxu0 %v1533
        %1537 = vmatprep.subr.bf16.mxu0 0
        %1538 = vmatpush1.bf16.msra.mxu0 0
        %1539 = vmatprep.subr.bf16.mxu0 0
        %1540 = vmatpush1.bf16.msra.mxu0 0
        %1541 = vmatprep.subr.bf16.mxu0 0
        %1542 = vmatpush1.bf16.msra.mxu0 0
        %1543 = vmatprep.subr.bf16.mxu0 0
        %1544 = vmatpush1.bf16.msra.mxu0 0
        %1545 = vmatprep.subr.bf16.mxu0 0
        %1546 = vmatpush1.bf16.msra.mxu0 0
        %1547 = vmatprep.subr.bf16.mxu0 0
        %1548 = vmatpush1.bf16.msra.mxu0 0
        %1549 = vmatprep.subr.bf16.mxu0 0
        %1550 = vmatpush1.bf16.msra.mxu0 0
        %1551 = vmatprep.subr.bf16.mxu0 0
        %1552 = vmatpush1.bf16.msra.mxu0 0
        %1553 = vmatprep.subr.bf16.mxu0 0
        %1554 = vmatpush1.bf16.msra.mxu0 0
        %1555 = vmatprep.subr.bf16.mxu0 0
        %1556 = vmatpush1.bf16.msra.mxu0 0
        %1557 = vmatprep.subr.bf16.mxu0 0
        %1558 = vmatpush1.bf16.msra.mxu0 0
        %1559 = vmatprep.subr.bf16.mxu0 0
        %1560 = vmatpush1.bf16.msra.mxu0 0
        %1561 = vmatprep.subr.bf16.mxu0 0
        %1562 = vmatpush1.bf16.msra.mxu0 0
        %1563 = vmatprep.subr.bf16.mxu0 0
        %1564 = vmatpush1.bf16.msra.mxu0 0
        %1565 = vmatprep.subr.bf16.mxu0 0
        %1566 = vmatpush1.bf16.msra.mxu0 0
        %1567 = vmatprep.mubr.bf16.mxu0 0
        %1568 = vmatmul.mubr.bf16.gmra.mrb[0].mxu0 %v1530
        %v1569 = vpop.f32.mrb[0].mxu0
        %v1570 = vadd.f32 0.0, %v1569
        %v1571 = vpop.f32.mrb[0].mxu0
        %v1572 = vpop.f32.mrb[0].mxu0
        %v1573 = vpop.f32.mrb[0].mxu0
        %1574 = vdwg.mxu0
        %v1575 = vadd.f32 %v1521, %v1570
        %s1576 = scalar_lea.vmem %s3, 92
        %v1577 = vld [vmem:[%s1576] sm:$0xf]
        %1578 = vrot.lane.b32.xlu0 %v1360, 116
        %v1579 = vpop.permute.xlu0 %1578
        %1580 = vrot.lane.b32.xlu0 %v1361, 116
        %v1581 = vpop.permute.xlu0 %1580
        %v1582 = vsel %vm598, %v1579, %v1581
        %v1584 = vsel %vm333, %v1577, 0
        %v1587 = vsel %vm337, %v1582, 0
        %1589 = vmatprep.subr.bf16.mxu0 0
        %1590 = vmatpush1.bf16.msra.mxu0 %v1587
        %1591 = vmatprep.subr.bf16.mxu0 0
        %1592 = vmatpush1.bf16.msra.mxu0 0
        %1593 = vmatprep.subr.bf16.mxu0 0
        %1594 = vmatpush1.bf16.msra.mxu0 0
        %1595 = vmatprep.subr.bf16.mxu0 0
        %1596 = vmatpush1.bf16.msra.mxu0 0
        %1597 = vmatprep.subr.bf16.mxu0 0
        %1598 = vmatpush1.bf16.msra.mxu0 0
        %1599 = vmatprep.subr.bf16.mxu0 0
        %1600 = vmatpush1.bf16.msra.mxu0 0
        %1601 = vmatprep.subr.bf16.mxu0 0
        %1602 = vmatpush1.bf16.msra.mxu0 0
        %1603 = vmatprep.subr.bf16.mxu0 0
        %1604 = vmatpush1.bf16.msra.mxu0 0
        %1605 = vmatprep.subr.bf16.mxu0 0
        %1606 = vmatpush1.bf16.msra.mxu0 0
        %1607 = vmatprep.subr.bf16.mxu0 0
        %1608 = vmatpush1.bf16.msra.mxu0 0
        %1609 = vmatprep.subr.bf16.mxu0 0
        %1610 = vmatpush1.bf16.msra.mxu0 0
        %1611 = vmatprep.subr.bf16.mxu0 0
        %1612 = vmatpush1.bf16.msra.mxu0 0
        %1613 = vmatprep.subr.bf16.mxu0 0
        %1614 = vmatpush1.bf16.msra.mxu0 0
        %1615 = vmatprep.subr.bf16.mxu0 0
        %1616 = vmatpush1.bf16.msra.mxu0 0
        %1617 = vmatprep.subr.bf16.mxu0 0
        %1618 = vmatpush1.bf16.msra.mxu0 0
        %1619 = vmatprep.subr.bf16.mxu0 0
        %1620 = vmatpush1.bf16.msra.mxu0 0
        %1621 = vmatprep.mubr.bf16.mxu0 0
        %1622 = vmatmul.mubr.bf16.gmra.mrb[0].mxu0 %v1584
        %v1623 = vpop.f32.mrb[0].mxu0
        %v1624 = vadd.f32 0.0, %v1623
        %v1625 = vpop.f32.mrb[0].mxu0
        %v1626 = vpop.f32.mrb[0].mxu0
        %v1627 = vpop.f32.mrb[0].mxu0
        %1628 = vdwg.mxu0
        %v1629 = vadd.f32 %v1575, %v1624
        %s1630 = scalar_lea.vmem %s3, 96
        %v1631 = vld [vmem:[%s1630] sm:$0xf]
        %1632 = vrot.lane.b32.xlu0 %v1360, 108
        %v1633 = vpop.permute.xlu0 %1632
        %1634 = vrot.lane.b32.xlu0 %v1361, 108
        %v1635 = vpop.permute.xlu0 %1634
        %v1636 = vsel %vm653, %v1633, %v1635
        %v1638 = vsel %vm333, %v1631, 0
        %v1641 = vsel %vm337, %v1636, 0
        %1643 = vmatprep.subr.bf16.mxu0 0
        %1644 = vmatpush1.bf16.msra.mxu0 %v1641
        %1645 = vmatprep.subr.bf16.mxu0 0
        %1646 = vmatpush1.bf16.msra.mxu0 0
        %1647 = vmatprep.subr.bf16.mxu0 0
        %1648 = vmatpush1.bf16.msra.mxu0 0
        %1649 = vmatprep.subr.bf16.mxu0 0
        %1650 = vmatpush1.bf16.msra.mxu0 0
        %1651 = vmatprep.subr.bf16.mxu0 0
        %1652 = vmatpush1.bf16.msra.mxu0 0
        %1653 = vmatprep.subr.bf16.mxu0 0
        %1654 = vmatpush1.bf16.msra.mxu0 0
        %1655 = vmatprep.subr.bf16.mxu0 0
        %1656 = vmatpush1.bf16.msra.mxu0 0
        %1657 = vmatprep.subr.bf16.mxu0 0
        %1658 = vmatpush1.bf16.msra.mxu0 0
        %1659 = vmatprep.subr.bf16.mxu0 0
        %1660 = vmatpush1.bf16.msra.mxu0 0
        %1661 = vmatprep.subr.bf16.mxu0 0
        %1662 = vmatpush1.bf16.msra.mxu0 0
        %1663 = vmatprep.subr.bf16.mxu0 0
        %1664 = vmatpush1.bf16.msra.mxu0 0
        %1665 = vmatprep.subr.bf16.mxu0 0
        %1666 = vmatpush1.bf16.msra.mxu0 0
        %1667 = vmatprep.subr.bf16.mxu0 0
        %1668 = vmatpush1.bf16.msra.mxu0 0
        %1669 = vmatprep.subr.bf16.mxu0 0
        %1670 = vmatpush1.bf16.msra.mxu0 0
        %1671 = vmatprep.subr.bf16.mxu0 0
        %1672 = vmatpush1.bf16.msra.mxu0 0
        %1673 = vmatprep.subr.bf16.mxu0 0
        %1674 = vmatpush1.bf16.msra.mxu0 0
        %1675 = vmatprep.mubr.bf16.mxu0 0
        %1676 = vmatmul.mubr.bf16.gmra.mrb[0].mxu0 %v1638
        %v1677 = vpop.f32.mrb[0].mxu0
        %v1678 = vadd.f32 0.0, %v1677
        %v1679 = vpop.f32.mrb[0].mxu0
        %v1680 = vpop.f32.mrb[0].mxu0
        %v1681 = vpop.f32.mrb[0].mxu0
        %1682 = vdwg.mxu0
        %v1683 = vadd.f32 %v1629, %v1678
        %s1684 = scalar_lea.vmem %s3, 100
        %v1685 = vld [vmem:[%s1684] sm:$0xf]
        %1686 = vrot.lane.b32.xlu0 %v1360, 107
        %v1687 = vpop.permute.xlu0 %1686
        %1688 = vrot.lane.b32.xlu0 %v1361, 107
        %v1689 = vpop.permute.xlu0 %1688
        %v1690 = vsel %vm708, %v1687, %v1689
        %v1692 = vsel %vm333, %v1685, 0
        %v1695 = vsel %vm337, %v1690, 0
        %1697 = vmatprep.subr.bf16.mxu0 0
        %1698 = vmatpush1.bf16.msra.mxu0 %v1695
        %1699 = vmatprep.subr.bf16.mxu0 0
        %1700 = vmatpush1.bf16.msra.mxu0 0
        %1701 = vmatprep.subr.bf16.mxu0 0
        %1702 = vmatpush1.bf16.msra.mxu0 0
        %1703 = vmatprep.subr.bf16.mxu0 0
        %1704 = vmatpush1.bf16.msra.mxu0 0
        %1705 = vmatprep.subr.bf16.mxu0 0
        %1706 = vmatpush1.bf16.msra.mxu0 0
        %1707 = vmatprep.subr.bf16.mxu0 0
        %1708 = vmatpush1.bf16.msra.mxu0 0
        %1709 = vmatprep.subr.bf16.mxu0 0
        %1710 = vmatpush1.bf16.msra.mxu0 0
        %1711 = vmatprep.subr.bf16.mxu0 0
        %1712 = vmatpush1.bf16.msra.mxu0 0
        %1713 = vmatprep.subr.bf16.mxu0 0
        %1714 = vmatpush1.bf16.msra.mxu0 0
        %1715 = vmatprep.subr.bf16.mxu0 0
        %1716 = vmatpush1.bf16.msra.mxu0 0
        %1717 = vmatprep.subr.bf16.mxu0 0
        %1718 = vmatpush1.bf16.msra.mxu0 0
        %1719 = vmatprep.subr.bf16.mxu0 0
        %1720 = vmatpush1.bf16.msra.mxu0 0
        %1721 = vmatprep.subr.bf16.mxu0 0
        %1722 = vmatpush1.bf16.msra.mxu0 0
        %1723 = vmatprep.subr.bf16.mxu0 0
        %1724 = vmatpush1.bf16.msra.mxu0 0
        %1725 = vmatprep.subr.bf16.mxu0 0
        %1726 = vmatpush1.bf16.msra.mxu0 0
        %1727 = vmatprep.subr.bf16.mxu0 0
        %1728 = vmatpush1.bf16.msra.mxu0 0
        %1729 = vmatprep.mubr.bf16.mxu0 0
        %1730 = vmatmul.mubr.bf16.gmra.mrb[0].mxu0 %v1692
        %v1731 = vpop.f32.mrb[0].mxu0
        %v1732 = vadd.f32 0.0, %v1731
        %v1733 = vpop.f32.mrb[0].mxu0
        %v1734 = vpop.f32.mrb[0].mxu0
        %v1735 = vpop.f32.mrb[0].mxu0
        %1736 = vdwg.mxu0
        %v1737 = vadd.f32 %v1683, %v1732
        %s1738 = scalar_lea.vmem %s3, 104
        %v1739 = vld [vmem:[%s1738] sm:$0xf]
        %1740 = vrot.lane.b32.xlu0 %v1360, 106
        %v1741 = vpop.permute.xlu0 %1740
        %1742 = vrot.lane.b32.xlu0 %v1361, 106
        %v1743 = vpop.permute.xlu0 %1742
        %v1744 = vsel %vm763, %v1741, %v1743
        %v1746 = vsel %vm333, %v1739, 0
        %v1749 = vsel %vm337, %v1744, 0
        %1751 = vmatprep.subr.bf16.mxu0 0
        %1752 = vmatpush1.bf16.msra.mxu0 %v1749
        %1753 = vmatprep.subr.bf16.mxu0 0
        %1754 = vmatpush1.bf16.msra.mxu0 0
        %1755 = vmatprep.subr.bf16.mxu0 0
        %1756 = vmatpush1.bf16.msra.mxu0 0
        %1757 = vmatprep.subr.bf16.mxu0 0
        %1758 = vmatpush1.bf16.msra.mxu0 0
        %1759 = vmatprep.subr.bf16.mxu0 0
        %1760 = vmatpush1.bf16.msra.mxu0 0
        %1761 = vmatprep.subr.bf16.mxu0 0
        %1762 = vmatpush1.bf16.msra.mxu0 0
        %1763 = vmatprep.subr.bf16.mxu0 0
        %1764 = vmatpush1.bf16.msra.mxu0 0
        %1765 = vmatprep.subr.bf16.mxu0 0
        %1766 = vmatpush1.bf16.msra.mxu0 0
        %1767 = vmatprep.subr.bf16.mxu0 0
        %1768 = vmatpush1.bf16.msra.mxu0 0
        %1769 = vmatprep.subr.bf16.mxu0 0
        %1770 = vmatpush1.bf16.msra.mxu0 0
        %1771 = vmatprep.subr.bf16.mxu0 0
        %1772 = vmatpush1.bf16.msra.mxu0 0
        %1773 = vmatprep.subr.bf16.mxu0 0
        %1774 = vmatpush1.bf16.msra.mxu0 0
        %1775 = vmatprep.subr.bf16.mxu0 0
        %1776 = vmatpush1.bf16.msra.mxu0 0
        %1777 = vmatprep.subr.bf16.mxu0 0
        %1778 = vmatpush1.bf16.msra.mxu0 0
        %1779 = vmatprep.subr.bf16.mxu0 0
        %1780 = vmatpush1.bf16.msra.mxu0 0
        %1781 = vmatprep.subr.bf16.mxu0 0
        %1782 = vmatpush1.bf16.msra.mxu0 0
        %1783 = vmatprep.mubr.bf16.mxu0 0
        %1784 = vmatmul.mubr.bf16.gmra.mrb[0].mxu0 %v1746
        %v1785 = vpop.f32.mrb[0].mxu0
        %v1786 = vadd.f32 0.0, %v1785
        %v1787 = vpop.f32.mrb[0].mxu0
        %v1788 = vpop.f32.mrb[0].mxu0
        %v1789 = vpop.f32.mrb[0].mxu0
        %1790 = vdwg.mxu0
        %v1791 = vadd.f32 %v1737, %v1786
        %vm1792 = vcmp.ge.f32.partialorder %v1791, 0.0
        %v1793 = vmul.f32 %v1791, 0.01
        %v1794 = vsel %vm1792, %v1791, %v1793
        %v1795 = vpack.c.bf16 %v1794, %v1794
        %1796 = vst [vmem:[%s289] sm:$0xf] %v1795
        %s1797 = sand.u32 %s152, 1
        %s1798 = scalar_lea.sflag [#allocation4], %s1797
        %s1799 = sand.u32 %s152, 1
        %s1800 = smul.addr %s1799, 4
        %s1801 = scalar_lea.vmem [#allocation5], %s1800
        // Predicated region
        $region41: #{tpu_custom_call.1} parent=35 // pred_check
          %p1802 = pneg %p162
        $region42: #{tpu_custom_call.1} parent=35 // pred_check_branch
          %1804 = sbr.rel (%p1802) target = $region44
        $region43: #{tpu_custom_call.1} parent=35 // pred_region
          %s1806 = ssub.s32 64, 64
          %1807 = vsyncadd %s1798, %s1806
          %s1808 = smul.addr %s25, 8
          %s1809 = sadd.s32 %s26, %s1808
          %s1810 = smul.addr %s1809, 64
          %s1811 = scalar_lea.hbm %s4, %s1810
          %s1813 = sshll.u32 %s1801, 4
          %s1814 = int_to_ptr.vmem [resolvable:$true] %s1813
          %1816 = dma.vmem_to_hbm [thread:$0]  %s1814, 64, %s1811, %s1798
        $region44: #{tpu_custom_call.1} parent=35 // pred_fallthru
          _
      $region36: #{tpu_custom_call.1} parent=5 // pred_fallthru
        _
      %p1817 = scmp.le.s32.totalorder 2, %s16
      // Predicated region
      $region45: #{tpu_custom_call.1} parent=5 // pred_check
        %p1818 = pneg %p1817
      $region46: #{tpu_custom_call.1} parent=5 // pred_check_branch
        %1820 = sbr.rel (%p1818) target = $region48
      $region47: #{tpu_custom_call.1} parent=5 // pred_region
        %s1821 = ssub.s32 %s16, 2
        // Predicated region
        $region49: #{tpu_custom_call.1} parent=47 // pred_check
          %p1822 = pneg %p168
        $region50: #{tpu_custom_call.1} parent=47 // pred_check_branch
          %1824 = sbr.rel (%p1822) target = $region52
        $region51: #{tpu_custom_call.1} parent=47 // pred_region
          %s1825 = sand.u32 %s153, 1
          %s1826 = scalar_lea.sflag [#allocation4], %s1825
          %s1827 = sand.u32 %s153, 1
          %s1828 = smul.addr %s1827, 4
          %s1829 = scalar_lea.vmem [#allocation5], %s1828
          %1830 = dma.done %s1826, 64
        $region52: #{tpu_custom_call.1} parent=47 // pred_fallthru
          _
      $region48: #{tpu_custom_call.1} parent=5 // pred_fallthru
        _
    $region6: #{tpu_custom_call.1} parent=1 // loop_footer
      %s20 = sadd.s32 1, %s16
    $region7: #{tpu_custom_call.1} parent=1 // loop_footer_branch
      %15 = sbr.rel target = $region3
    $region8: #{tpu_custom_call.1} parent=1 // loop_exit
      _
    %1831 = vsyncpa [#allocation3], 1
    %s1832 = scalar_lea.sflag [#allocation3], 1
    %1833 = vsyncpa %s1832, 1
    %1834 = vsyncpa [#allocation4], 1
    %s1835 = scalar_lea.sflag [#allocation4], 1
    %1836 = vsyncpa %s1835, 1

</llo_original>
